<compile_context>
chip_gen: v7x
topology: tpu7x:2x2x1
jax: 0.10.0
libtpu: 0.0.40
codegen_flags: <defaults>
</compile_context>

<pallas_src>
import jax
import jax.numpy as jnp
from jax import lax
from jax.experimental import pallas as pl
from jax.experimental.pallas import tpu as pltpu

C = 1024   # channel dim consumed by mapper_channel (Linear(1024, 12))
S = 64     # spatial dim consumed by mapper_spatial (Linear(64, 1))
OUT = 12   # pose output dim


def pose_kernel(x_ref, ws_ref, wc_ref, bc_ref, o_ref):
    # x_ref  : (TB, C, S)   batch tile
    # ws_ref : (1, S)       mapper_spatial weight (native PyTorch layout)
    # wc_ref : (OUT, C)     mapper_channel weight (native PyTorch layout)
    # bc_ref : (1, OUT)     fused bias (channel bias + spatial bias folded in)
    # o_ref  : (TB, OUT)
    x = x_ref[...]                                   # (TB, C, S)
    ws = ws_ref[...].reshape(1, 1, S)                # (1, 1, S)
    # mapper_spatial as multiply + lane-reduce: (TB, C, S) -> (TB, C)
    y = jnp.sum(x * ws, axis=-1)                     # (TB, C), f32
    # mapper_channel: contract y dim 1 with wc dim 1 -> (TB, OUT)
    out = lax.dot_general(
        y, wc_ref[...],
        dimension_numbers=(((1,), (1,)), ((), ())),
        preferred_element_type=jnp.float32)          # (TB, OUT)
    o_ref[...] = (out + bc_ref[...]).astype(o_ref.dtype)


def pose_predictor(x, w_spatial, b_spatial, w_channel, b_channel, *, tb=8):
    """x: (B, C, S). Weights in PyTorch Linear convention:
       w_spatial: (1, S), b_spatial: (1,), w_channel: (OUT, C), b_channel: (OUT,)."""
    B = x.shape[0]
    x = x.astype(jnp.float32)
    ws = w_spatial.reshape(1, S).astype(jnp.float32)          # (1, S)
    wc = w_channel.astype(jnp.float32)                        # (OUT, C), native
    # Fold spatial bias: (x@ws + bs)@wc^T + bc == x@ws@wc^T + (bs*rowsum(wc) + bc)
    bc_eff = (b_channel.astype(jnp.float32)
              + b_spatial.astype(jnp.float32)[0] * wc.sum(axis=1)
              ).reshape(1, OUT)                               # (1, OUT)

    TB = min(tb, B)
    n_blocks = pl.cdiv(B, TB)
    Bp = n_blocks * TB
    if Bp != B:
        x = jnp.pad(x, ((0, Bp - B), (0, 0), (0, 0)))

    out = pl.pallas_call(
        pose_kernel,
        out_shape=jax.ShapeDtypeStruct((Bp, OUT), jnp.float32),
        grid_spec=pltpu.PrefetchScalarGridSpec(
            num_scalar_prefetch=0,
            grid=(n_blocks,),
            in_specs=[
                pl.BlockSpec((TB, C, S), lambda b: (b, 0, 0)),   # x batch tile
                pl.BlockSpec((1, S), lambda b: (0, 0)),          # ws
                pl.BlockSpec((OUT, C), lambda b: (0, 0)),        # wc (12, 1024)
                pl.BlockSpec((1, OUT), lambda b: (0, 0)),        # bc_eff
            ],
            out_specs=pl.BlockSpec((TB, OUT), lambda b: (b, 0)),
        ),
        compiler_params=pltpu.CompilerParams(
            dimension_semantics=("parallel",)),
    )(x, ws, wc, bc_eff)
    return out[:B]


def pose_predictor_ref(x, w_spatial, b_spatial, w_channel, b_channel):
    y = jnp.einsum("bcs,os->bco", x, w_spatial) + b_spatial        # (B, C, 1)
    yt = jnp.swapaxes(y, 1, 2)                                     # (B, 1, C)
    out = jnp.einsum("bic,oc->bio", yt, w_channel) + b_channel     # (B, 1, OUT)
    return out[:, 0, :]


if __name__ == "__main__":
    key = jax.random.PRNGKey(0)
    kx, kws, kbs, kwc, kbc = jax.random.split(key, 5)

    B = 2
    x = jax.random.normal(kx, (B, C, S), dtype=jnp.float32)

    # Deterministic synthetic parameters (PyTorch Linear weight layout: (out, in)).
    w_spatial = jax.random.normal(kws, (1, S), dtype=jnp.float32) * 0.1
    b_spatial = jax.random.normal(kbs, (1,), dtype=jnp.float32) * 0.1
    w_channel = jax.random.normal(kwc, (OUT, C), dtype=jnp.float32) * 0.03
    b_channel = jax.random.normal(kbc, (OUT,), dtype=jnp.float32) * 0.1

    out = pose_predictor(x, w_spatial, b_spatial, w_channel, b_channel)
    out = jax.block_until_ready(out)

    ref = pose_predictor_ref(x, w_spatial, b_spatial, w_channel, b_channel)
    assert out.shape == (B, OUT), out.shape
    assert jnp.allclose(out, ref, atol=1e-3, rtol=1e-3), (out, ref)

    print("KERNEL_OK")
</pallas_src>

<mosaic_0001>
module attributes {stable_mosaic.version = 11 : i64} {
  func.func @pose_kernel(%arg0: i32, %arg1: memref<2x1024x64xf32, #tpu.memory_space<vmem>>, %arg2: memref<1x64xf32, #tpu.memory_space<vmem>>, %arg3: memref<12x1024xf32, #tpu.memory_space<vmem>>, %arg4: memref<1x12xf32, #tpu.memory_space<vmem>>, %arg5: memref<2x12xf32, #tpu.memory_space<vmem>>) attributes {dimension_semantics = [#tpu.dimension_semantics<parallel>], iteration_bounds = array<i64: 1>, scalar_prefetch = 0 : i64, scratch_operands = 0 : i64, tpu.core_type = #tpu.core_type<tc>, window_params = [{transform_indices = @transform_0, window_bounds = array<i64: 2, 1024, 64>}, {pipeline_mode = #tpu.pipeline_mode<synchronous>, transform_indices = @transform_1, window_bounds = array<i64: 1, 64>}, {pipeline_mode = #tpu.pipeline_mode<synchronous>, transform_indices = @transform_2, window_bounds = array<i64: 12, 1024>}, {pipeline_mode = #tpu.pipeline_mode<synchronous>, transform_indices = @transform_3, window_bounds = array<i64: 1, 12>}, {transform_indices = @transform_4, window_bounds = array<i64: 2, 12>}]} {
    %c0 = arith.constant 0 : index
    %c0_0 = arith.constant 0 : index
    %c0_1 = arith.constant 0 : index
    %0 = vector.load %arg1[%c0, %c0_0, %c0_1] : memref<2x1024x64xf32, #tpu.memory_space<vmem>>, vector<2x1024x64xf32>
    %c0_2 = arith.constant 0 : index
    %c0_3 = arith.constant 0 : index
    %1 = vector.load %arg2[%c0_2, %c0_3] : memref<1x64xf32, #tpu.memory_space<vmem>>, vector<1x64xf32>
    %2 = vector.shape_cast %1 : vector<1x64xf32> to vector<1x1x64xf32>
    %3 = vector.broadcast %2 : vector<1x1x64xf32> to vector<2x1024x64xf32>
    %4 = arith.mulf %0, %3 : vector<2x1024x64xf32>
    %cst = arith.constant dense<0.000000e+00> : vector<2x1024xf32>
    %5 = vector.multi_reduction <add>, %4, %cst [2] : vector<2x1024x64xf32> to vector<2x1024xf32>
    %c0_4 = arith.constant 0 : index
    %c0_5 = arith.constant 0 : index
    %6 = vector.load %arg3[%c0_4, %c0_5] : memref<12x1024xf32, #tpu.memory_space<vmem>>, vector<12x1024xf32>
    %cst_6 = arith.constant dense<0.000000e+00> : vector<2x12xf32>
    %7 = tpu.matmul %5, %6, %cst_6 {dimension_numbers = #tpu.dot_dimension_numbers<[1], [1], [0], [0], [0, 0, 1, 0], [], []>} : vector<2x1024xf32>, vector<12x1024xf32>, vector<2x12xf32> -> vector<2x12xf32>
    %c0_7 = arith.constant 0 : index
    %c0_8 = arith.constant 0 : index
    %8 = vector.load %arg4[%c0_7, %c0_8] : memref<1x12xf32, #tpu.memory_space<vmem>>, vector<1x12xf32>
    %9 = vector.broadcast %8 : vector<1x12xf32> to vector<2x12xf32>
    %10 = arith.addf %7, %9 : vector<2x12xf32>
    %c0_9 = arith.constant 0 : index
    %c0_10 = arith.constant 0 : index
    %11 = vector.load %arg5[%c0_9, %c0_10] : memref<2x12xf32, #tpu.memory_space<vmem>>, vector<2x12xf32>
    tpu.vector_store %arg5[%c0_9, %c0_10], %10 {strides = array<i32>} : memref<2x12xf32, #tpu.memory_space<vmem>>, vector<2x12xf32>,
    return
  }
  func.func @transform_0(%arg0: i32) -> (i32, i32, i32) {
    %c0_i32 = arith.constant 0 : i32
    %c0_i32_0 = arith.constant 0 : i32
    %c0_i32_1 = arith.constant 0 : i32
    return %arg0, %c0_i32, %c0_i32_0 : i32, i32, i32
  }
  func.func @transform_1(%arg0: i32) -> (i32, i32) {
    %c0_i32 = arith.constant 0 : i32
    %c0_i32_0 = arith.constant 0 : i32
    %c0_i32_1 = arith.constant 0 : i32
    return %c0_i32, %c0_i32_0 : i32, i32
  }
  func.func @transform_2(%arg0: i32) -> (i32, i32) {
    %c0_i32 = arith.constant 0 : i32
    %c0_i32_0 = arith.constant 0 : i32
    %c0_i32_1 = arith.constant 0 : i32
    return %c0_i32, %c0_i32_0 : i32, i32
  }
  func.func @transform_3(%arg0: i32) -> (i32, i32) {
    %c0_i32 = arith.constant 0 : i32
    %c0_i32_0 = arith.constant 0 : i32
    %c0_i32_1 = arith.constant 0 : i32
    return %c0_i32, %c0_i32_0 : i32, i32
  }
  func.func @transform_4(%arg0: i32) -> (i32, i32) {
    %c0_i32 = arith.constant 0 : i32
    %c0_i32_0 = arith.constant 0 : i32
    return %arg0, %c0_i32 : i32, i32
  }
}

</mosaic_0001>

<llo_original>
// kernel: tpu_custom_call.1
$region0: #{tpu_custom_call.1}
  #allocation0 [shape = 'u32[]', space=smem, size = 0x4, offset = 0x4, fixed_abs, tag = 'smem constant byte address 0x4 - core index']
  #allocation1 [shape = 'u32[144,128]{1,0:T(1,128)}', space=vmem, size = 0x12000, scoped, tag = 'internal scratch']
  %s0 = inlined_call_operand.vmem [shape: f32[2,1024,64], index: 0, kind: input, shape index: {}]
  %s1 = inlined_call_operand.vmem [shape: f32[1,64], index: 1, kind: input, shape index: {}]
  %s2 = inlined_call_operand.vmem [shape: f32[12,1024], index: 2, kind: input, shape index: {}]
  %s3 = inlined_call_operand.vmem [shape: f32[1,12], index: 3, kind: input, shape index: {}]
  %s4 = inlined_call_operand.hbm [shape: f32[2,12], index: 4, kind: output, shape index: {}]
  %s5 = sld [smem:[#allocation0]]
  $region26: #{tpu_custom_call.1} parent=0
    _
  %s7 = ssub.s32 1, %s5
  %s8 = scalar_select 0, %s7, %s5
  $region1: #{tpu_custom_call.1} parent=0
    #allocation2 [shape = 'u8[1024]{0}', space=vmem, size = 0x400, scoped, tag = 'output window, operand 0, single buffered']
    #allocation3 [shape = 's32[1]{0}', space=sflag, size = 0x4, scoped, tag = 'scoped memory for tpu_custom_call.1']
    %9 = vsyncpa [#allocation3], 0
    // Predicated region
    $region2: #{tpu_custom_call.1} parent=1 // pred_check
      _
    $region3: #{tpu_custom_call.1} parent=1 // pred_check_branch
      %11 = sbr.rel (0) target = $region5
    $region4: #{tpu_custom_call.1} parent=1 // pred_region
      _
    $region5: #{tpu_custom_call.1} parent=1 // pred_fallthru
      _
    // Predicated region
    $region6: #{tpu_custom_call.1} parent=1 // pred_check
      _
    $region7: #{tpu_custom_call.1} parent=1 // pred_check_branch
      %13 = sbr.rel (0) target = $region9
    $region8: #{tpu_custom_call.1} parent=1 // pred_region
      _
    $region9: #{tpu_custom_call.1} parent=1 // pred_fallthru
      _
    // Predicated region
    $region10: #{tpu_custom_call.1} parent=1 // pred_check
      _
    $region11: #{tpu_custom_call.1} parent=1 // pred_check_branch
      %15 = sbr.rel (0) target = $region13
    $region12: #{tpu_custom_call.1} parent=1 // pred_region
      _
    $region13: #{tpu_custom_call.1} parent=1 // pred_fallthru
      _
    // Predicated region
    $region14: #{tpu_custom_call.1} parent=1 // pred_check
      _
    $region15: #{tpu_custom_call.1} parent=1 // pred_check_branch
      %17 = sbr.rel (0) target = $region17
    $region16: #{tpu_custom_call.1} parent=1 // pred_region
      _
    $region17: #{tpu_custom_call.1} parent=1 // pred_fallthru
      _
    %v18 = vld [vmem:[%s0] sm:$0xff]
    %v19 = vld [vmem:[%s0 + $0x8] sm:$0xff]
    %v20 = vld [vmem:[%s0 + $0x10] sm:$0xff]
    %v21 = vld [vmem:[%s0 + $0x18] sm:$0xff]
    %v22 = vld [vmem:[%s0 + $0x20] sm:$0xff]
    %v23 = vld [vmem:[%s0 + $0x28] sm:$0xff]
    %v24 = vld [vmem:[%s0 + $0x30] sm:$0xff]
    %v25 = vld [vmem:[%s0 + $0x38] sm:$0xff]
    %v26 = vld [vmem:[%s0 + $0x40] sm:$0xff]
    %v27 = vld [vmem:[%s0 + $0x48] sm:$0xff]
    %v28 = vld [vmem:[%s0 + $0x50] sm:$0xff]
    %v29 = vld [vmem:[%s0 + $0x58] sm:$0xff]
    %v30 = vld [vmem:[%s0 + $0x60] sm:$0xff]
    %v31 = vld [vmem:[%s0 + $0x68] sm:$0xff]
    %v32 = vld [vmem:[%s0 + $0x70] sm:$0xff]
    %v33 = vld [vmem:[%s0 + $0x78] sm:$0xff]
    %v34 = vld [vmem:[%s0 + $0x80] sm:$0xff]
    %v35 = vld [vmem:[%s0 + $0x88] sm:$0xff]
    %v36 = vld [vmem:[%s0 + $0x90] sm:$0xff]
    %v37 = vld [vmem:[%s0 + $0x98] sm:$0xff]
    %v38 = vld [vmem:[%s0 + $0xa0] sm:$0xff]
    %v39 = vld [vmem:[%s0 + $0xa8] sm:$0xff]
    %v40 = vld [vmem:[%s0 + $0xb0] sm:$0xff]
    %v41 = vld [vmem:[%s0 + $0xb8] sm:$0xff]
    %v42 = vld [vmem:[%s0 + $0xc0] sm:$0xff]
    %v43 = vld [vmem:[%s0 + $0xc8] sm:$0xff]
    %v44 = vld [vmem:[%s0 + $0xd0] sm:$0xff]
    %v45 = vld [vmem:[%s0 + $0xd8] sm:$0xff]
    %v46 = vld [vmem:[%s0 + $0xe0] sm:$0xff]
    %v47 = vld [vmem:[%s0 + $0xe8] sm:$0xff]
    %v48 = vld [vmem:[%s0 + $0xf0] sm:$0xff]
    %v49 = vld [vmem:[%s0 + $0xf8] sm:$0xff]
    %v50 = vld [vmem:[%s0 + $0x100] sm:$0xff]
    %v51 = vld [vmem:[%s0 + $0x108] sm:$0xff]
    %v52 = vld [vmem:[%s0 + $0x110] sm:$0xff]
    %v53 = vld [vmem:[%s0 + $0x118] sm:$0xff]
    %v54 = vld [vmem:[%s0 + $0x120] sm:$0xff]
    %v55 = vld [vmem:[%s0 + $0x128] sm:$0xff]
    %v56 = vld [vmem:[%s0 + $0x130] sm:$0xff]
    %v57 = vld [vmem:[%s0 + $0x138] sm:$0xff]
    %v58 = vld [vmem:[%s0 + $0x140] sm:$0xff]
    %v59 = vld [vmem:[%s0 + $0x148] sm:$0xff]
    %v60 = vld [vmem:[%s0 + $0x150] sm:$0xff]
    %v61 = vld [vmem:[%s0 + $0x158] sm:$0xff]
    %v62 = vld [vmem:[%s0 + $0x160] sm:$0xff]
    %v63 = vld [vmem:[%s0 + $0x168] sm:$0xff]
    %v64 = vld [vmem:[%s0 + $0x170] sm:$0xff]
    %v65 = vld [vmem:[%s0 + $0x178] sm:$0xff]
    %v66 = vld [vmem:[%s0 + $0x180] sm:$0xff]
    %v67 = vld [vmem:[%s0 + $0x188] sm:$0xff]
    %v68 = vld [vmem:[%s0 + $0x190] sm:$0xff]
    %v69 = vld [vmem:[%s0 + $0x198] sm:$0xff]
    %v70 = vld [vmem:[%s0 + $0x1a0] sm:$0xff]
    %v71 = vld [vmem:[%s0 + $0x1a8] sm:$0xff]
    %v72 = vld [vmem:[%s0 + $0x1b0] sm:$0xff]
    %v73 = vld [vmem:[%s0 + $0x1b8] sm:$0xff]
    %v74 = vld [vmem:[%s0 + $0x1c0] sm:$0xff]
    %v75 = vld [vmem:[%s0 + $0x1c8] sm:$0xff]
    %v76 = vld [vmem:[%s0 + $0x1d0] sm:$0xff]
    %v77 = vld [vmem:[%s0 + $0x1d8] sm:$0xff]
    %v78 = vld [vmem:[%s0 + $0x1e0] sm:$0xff]
    %v79 = vld [vmem:[%s0 + $0x1e8] sm:$0xff]
    %v80 = vld [vmem:[%s0 + $0x1f0] sm:$0xff]
    %v81 = vld [vmem:[%s0 + $0x1f8] sm:$0xff]
    %v82 = vld [vmem:[%s0 + $0x200] sm:$0xff]
    %v83 = vld [vmem:[%s0 + $0x208] sm:$0xff]
    %v84 = vld [vmem:[%s0 + $0x210] sm:$0xff]
    %v85 = vld [vmem:[%s0 + $0x218] sm:$0xff]
    %v86 = vld [vmem:[%s0 + $0x220] sm:$0xff]
    %v87 = vld [vmem:[%s0 + $0x228] sm:$0xff]
    %v88 = vld [vmem:[%s0 + $0x230] sm:$0xff]
    %v89 = vld [vmem:[%s0 + $0x238] sm:$0xff]
    %v90 = vld [vmem:[%s0 + $0x240] sm:$0xff]
    %v91 = vld [vmem:[%s0 + $0x248] sm:$0xff]
    %v92 = vld [vmem:[%s0 + $0x250] sm:$0xff]
    %v93 = vld [vmem:[%s0 + $0x258] sm:$0xff]
    %v94 = vld [vmem:[%s0 + $0x260] sm:$0xff]
    %v95 = vld [vmem:[%s0 + $0x268] sm:$0xff]
    %v96 = vld [vmem:[%s0 + $0x270] sm:$0xff]
    %v97 = vld [vmem:[%s0 + $0x278] sm:$0xff]
    %v98 = vld [vmem:[%s0 + $0x280] sm:$0xff]
    %v99 = vld [vmem:[%s0 + $0x288] sm:$0xff]
    %v100 = vld [vmem:[%s0 + $0x290] sm:$0xff]
    %v101 = vld [vmem:[%s0 + $0x298] sm:$0xff]
    %v102 = vld [vmem:[%s0 + $0x2a0] sm:$0xff]
    %v103 = vld [vmem:[%s0 + $0x2a8] sm:$0xff]
    %v104 = vld [vmem:[%s0 + $0x2b0] sm:$0xff]
    %v105 = vld [vmem:[%s0 + $0x2b8] sm:$0xff]
    %v106 = vld [vmem:[%s0 + $0x2c0] sm:$0xff]
    %v107 = vld [vmem:[%s0 + $0x2c8] sm:$0xff]
    %v108 = vld [vmem:[%s0 + $0x2d0] sm:$0xff]
    %v109 = vld [vmem:[%s0 + $0x2d8] sm:$0xff]
    %v110 = vld [vmem:[%s0 + $0x2e0] sm:$0xff]
    %v111 = vld [vmem:[%s0 + $0x2e8] sm:$0xff]
    %v112 = vld [vmem:[%s0 + $0x2f0] sm:$0xff]
    %v113 = vld [vmem:[%s0 + $0x2f8] sm:$0xff]
    %v114 = vld [vmem:[%s0 + $0x300] sm:$0xff]
    %v115 = vld [vmem:[%s0 + $0x308] sm:$0xff]
    %v116 = vld [vmem:[%s0 + $0x310] sm:$0xff]
    %v117 = vld [vmem:[%s0 + $0x318] sm:$0xff]
    %v118 = vld [vmem:[%s0 + $0x320] sm:$0xff]
    %v119 = vld [vmem:[%s0 + $0x328] sm:$0xff]
    %v120 = vld [vmem:[%s0 + $0x330] sm:$0xff]
    %v121 = vld [vmem:[%s0 + $0x338] sm:$0xff]
    %v122 = vld [vmem:[%s0 + $0x340] sm:$0xff]
    %v123 = vld [vmem:[%s0 + $0x348] sm:$0xff]
    %v124 = vld [vmem:[%s0 + $0x350] sm:$0xff]
    %v125 = vld [vmem:[%s0 + $0x358] sm:$0xff]
    %v126 = vld [vmem:[%s0 + $0x360] sm:$0xff]
    %v127 = vld [vmem:[%s0 + $0x368] sm:$0xff]
    %v128 = vld [vmem:[%s0 + $0x370] sm:$0xff]
    %v129 = vld [vmem:[%s0 + $0x378] sm:$0xff]
    %v130 = vld [vmem:[%s0 + $0x380] sm:$0xff]
    %v131 = vld [vmem:[%s0 + $0x388] sm:$0xff]
    %v132 = vld [vmem:[%s0 + $0x390] sm:$0xff]
    %v133 = vld [vmem:[%s0 + $0x398] sm:$0xff]
    %v134 = vld [vmem:[%s0 + $0x3a0] sm:$0xff]
    %v135 = vld [vmem:[%s0 + $0x3a8] sm:$0xff]
    %v136 = vld [vmem:[%s0 + $0x3b0] sm:$0xff]
    %v137 = vld [vmem:[%s0 + $0x3b8] sm:$0xff]
    %v138 = vld [vmem:[%s0 + $0x3c0] sm:$0xff]
    %v139 = vld [vmem:[%s0 + $0x3c8] sm:$0xff]
    %v140 = vld [vmem:[%s0 + $0x3d0] sm:$0xff]
    %v141 = vld [vmem:[%s0 + $0x3d8] sm:$0xff]
    %v142 = vld [vmem:[%s0 + $0x3e0] sm:$0xff]
    %v143 = vld [vmem:[%s0 + $0x3e8] sm:$0xff]
    %v144 = vld [vmem:[%s0 + $0x3f0] sm:$0xff]
    %v145 = vld [vmem:[%s0 + $0x3f8] sm:$0xff]
    %v146 = vld [vmem:[%s0 + $0x400] sm:$0xff]
    %v147 = vld [vmem:[%s0 + $0x408] sm:$0xff]
    %v148 = vld [vmem:[%s0 + $0x410] sm:$0xff]
    %v149 = vld [vmem:[%s0 + $0x418] sm:$0xff]
    %v150 = vld [vmem:[%s0 + $0x420] sm:$0xff]
    %v151 = vld [vmem:[%s0 + $0x428] sm:$0xff]
    %v152 = vld [vmem:[%s0 + $0x430] sm:$0xff]
    %v153 = vld [vmem:[%s0 + $0x438] sm:$0xff]
    %v154 = vld [vmem:[%s0 + $0x440] sm:$0xff]
    %v155 = vld [vmem:[%s0 + $0x448] sm:$0xff]
    %v156 = vld [vmem:[%s0 + $0x450] sm:$0xff]
    %v157 = vld [vmem:[%s0 + $0x458] sm:$0xff]
    %v158 = vld [vmem:[%s0 + $0x460] sm:$0xff]
    %v159 = vld [vmem:[%s0 + $0x468] sm:$0xff]
    %v160 = vld [vmem:[%s0 + $0x470] sm:$0xff]
    %v161 = vld [vmem:[%s0 + $0x478] sm:$0xff]
    %v162 = vld [vmem:[%s0 + $0x480] sm:$0xff]
    %v163 = vld [vmem:[%s0 + $0x488] sm:$0xff]
    %v164 = vld [vmem:[%s0 + $0x490] sm:$0xff]
    %v165 = vld [vmem:[%s0 + $0x498] sm:$0xff]
    %v166 = vld [vmem:[%s0 + $0x4a0] sm:$0xff]
    %v167 = vld [vmem:[%s0 + $0x4a8] sm:$0xff]
    %v168 = vld [vmem:[%s0 + $0x4b0] sm:$0xff]
    %v169 = vld [vmem:[%s0 + $0x4b8] sm:$0xff]
    %v170 = vld [vmem:[%s0 + $0x4c0] sm:$0xff]
    %v171 = vld [vmem:[%s0 + $0x4c8] sm:$0xff]
    %v172 = vld [vmem:[%s0 + $0x4d0] sm:$0xff]
    %v173 = vld [vmem:[%s0 + $0x4d8] sm:$0xff]
    %v174 = vld [vmem:[%s0 + $0x4e0] sm:$0xff]
    %v175 = vld [vmem:[%s0 + $0x4e8] sm:$0xff]
    %v176 = vld [vmem:[%s0 + $0x4f0] sm:$0xff]
    %v177 = vld [vmem:[%s0 + $0x4f8] sm:$0xff]
    %v178 = vld [vmem:[%s0 + $0x500] sm:$0xff]
    %v179 = vld [vmem:[%s0 + $0x508] sm:$0xff]
    %v180 = vld [vmem:[%s0 + $0x510] sm:$0xff]
    %v181 = vld [vmem:[%s0 + $0x518] sm:$0xff]
    %v182 = vld [vmem:[%s0 + $0x520] sm:$0xff]
    %v183 = vld [vmem:[%s0 + $0x528] sm:$0xff]
    %v184 = vld [vmem:[%s0 + $0x530] sm:$0xff]
    %v185 = vld [vmem:[%s0 + $0x538] sm:$0xff]
    %v186 = vld [vmem:[%s0 + $0x540] sm:$0xff]
    %v187 = vld [vmem:[%s0 + $0x548] sm:$0xff]
    %v188 = vld [vmem:[%s0 + $0x550] sm:$0xff]
    %v189 = vld [vmem:[%s0 + $0x558] sm:$0xff]
    %v190 = vld [vmem:[%s0 + $0x560] sm:$0xff]
    %v191 = vld [vmem:[%s0 + $0x568] sm:$0xff]
    %v192 = vld [vmem:[%s0 + $0x570] sm:$0xff]
    %v193 = vld [vmem:[%s0 + $0x578] sm:$0xff]
    %v194 = vld [vmem:[%s0 + $0x580] sm:$0xff]
    %v195 = vld [vmem:[%s0 + $0x588] sm:$0xff]
    %v196 = vld [vmem:[%s0 + $0x590] sm:$0xff]
    %v197 = vld [vmem:[%s0 + $0x598] sm:$0xff]
    %v198 = vld [vmem:[%s0 + $0x5a0] sm:$0xff]
    %v199 = vld [vmem:[%s0 + $0x5a8] sm:$0xff]
    %v200 = vld [vmem:[%s0 + $0x5b0] sm:$0xff]
    %v201 = vld [vmem:[%s0 + $0x5b8] sm:$0xff]
    %v202 = vld [vmem:[%s0 + $0x5c0] sm:$0xff]
    %v203 = vld [vmem:[%s0 + $0x5c8] sm:$0xff]
    %v204 = vld [vmem:[%s0 + $0x5d0] sm:$0xff]
    %v205 = vld [vmem:[%s0 + $0x5d8] sm:$0xff]
    %v206 = vld [vmem:[%s0 + $0x5e0] sm:$0xff]
    %v207 = vld [vmem:[%s0 + $0x5e8] sm:$0xff]
    %v208 = vld [vmem:[%s0 + $0x5f0] sm:$0xff]
    %v209 = vld [vmem:[%s0 + $0x5f8] sm:$0xff]
    %v210 = vld [vmem:[%s0 + $0x600] sm:$0xff]
    %v211 = vld [vmem:[%s0 + $0x608] sm:$0xff]
    %v212 = vld [vmem:[%s0 + $0x610] sm:$0xff]
    %v213 = vld [vmem:[%s0 + $0x618] sm:$0xff]
    %v214 = vld [vmem:[%s0 + $0x620] sm:$0xff]
    %v215 = vld [vmem:[%s0 + $0x628] sm:$0xff]
    %v216 = vld [vmem:[%s0 + $0x630] sm:$0xff]
    %v217 = vld [vmem:[%s0 + $0x638] sm:$0xff]
    %v218 = vld [vmem:[%s0 + $0x640] sm:$0xff]
    %v219 = vld [vmem:[%s0 + $0x648] sm:$0xff]
    %v220 = vld [vmem:[%s0 + $0x650] sm:$0xff]
    %v221 = vld [vmem:[%s0 + $0x658] sm:$0xff]
    %v222 = vld [vmem:[%s0 + $0x660] sm:$0xff]
    %v223 = vld [vmem:[%s0 + $0x668] sm:$0xff]
    %v224 = vld [vmem:[%s0 + $0x670] sm:$0xff]
    %v225 = vld [vmem:[%s0 + $0x678] sm:$0xff]
    %v226 = vld [vmem:[%s0 + $0x680] sm:$0xff]
    %v227 = vld [vmem:[%s0 + $0x688] sm:$0xff]
    %v228 = vld [vmem:[%s0 + $0x690] sm:$0xff]
    %v229 = vld [vmem:[%s0 + $0x698] sm:$0xff]
    %v230 = vld [vmem:[%s0 + $0x6a0] sm:$0xff]
    %v231 = vld [vmem:[%s0 + $0x6a8] sm:$0xff]
    %v232 = vld [vmem:[%s0 + $0x6b0] sm:$0xff]
    %v233 = vld [vmem:[%s0 + $0x6b8] sm:$0xff]
    %v234 = vld [vmem:[%s0 + $0x6c0] sm:$0xff]
    %v235 = vld [vmem:[%s0 + $0x6c8] sm:$0xff]
    %v236 = vld [vmem:[%s0 + $0x6d0] sm:$0xff]
    %v237 = vld [vmem:[%s0 + $0x6d8] sm:$0xff]
    %v238 = vld [vmem:[%s0 + $0x6e0] sm:$0xff]
    %v239 = vld [vmem:[%s0 + $0x6e8] sm:$0xff]
    %v240 = vld [vmem:[%s0 + $0x6f0] sm:$0xff]
    %v241 = vld [vmem:[%s0 + $0x6f8] sm:$0xff]
    %v242 = vld [vmem:[%s0 + $0x700] sm:$0xff]
    %v243 = vld [vmem:[%s0 + $0x708] sm:$0xff]
    %v244 = vld [vmem:[%s0 + $0x710] sm:$0xff]
    %v245 = vld [vmem:[%s0 + $0x718] sm:$0xff]
    %v246 = vld [vmem:[%s0 + $0x720] sm:$0xff]
    %v247 = vld [vmem:[%s0 + $0x728] sm:$0xff]
    %v248 = vld [vmem:[%s0 + $0x730] sm:$0xff]
    %v249 = vld [vmem:[%s0 + $0x738] sm:$0xff]
    %v250 = vld [vmem:[%s0 + $0x740] sm:$0xff]
    %v251 = vld [vmem:[%s0 + $0x748] sm:$0xff]
    %v252 = vld [vmem:[%s0 + $0x750] sm:$0xff]
    %v253 = vld [vmem:[%s0 + $0x758] sm:$0xff]
    %v254 = vld [vmem:[%s0 + $0x760] sm:$0xff]
    %v255 = vld [vmem:[%s0 + $0x768] sm:$0xff]
    %v256 = vld [vmem:[%s0 + $0x770] sm:$0xff]
    %v257 = vld [vmem:[%s0 + $0x778] sm:$0xff]
    %v258 = vld [vmem:[%s0 + $0x780] sm:$0xff]
    %v259 = vld [vmem:[%s0 + $0x788] sm:$0xff]
    %v260 = vld [vmem:[%s0 + $0x790] sm:$0xff]
    %v261 = vld [vmem:[%s0 + $0x798] sm:$0xff]
    %v262 = vld [vmem:[%s0 + $0x7a0] sm:$0xff]
    %v263 = vld [vmem:[%s0 + $0x7a8] sm:$0xff]
    %v264 = vld [vmem:[%s0 + $0x7b0] sm:$0xff]
    %v265 = vld [vmem:[%s0 + $0x7b8] sm:$0xff]
    %v266 = vld [vmem:[%s0 + $0x7c0] sm:$0xff]
    %v267 = vld [vmem:[%s0 + $0x7c8] sm:$0xff]
    %v268 = vld [vmem:[%s0 + $0x7d0] sm:$0xff]
    %v269 = vld [vmem:[%s0 + $0x7d8] sm:$0xff]
    %v270 = vld [vmem:[%s0 + $0x7e0] sm:$0xff]
    %v271 = vld [vmem:[%s0 + $0x7e8] sm:$0xff]
    %v272 = vld [vmem:[%s0 + $0x7f0] sm:$0xff]
    %v273 = vld [vmem:[%s0 + $0x7f8] sm:$0xff]
    %v274 = vld [vmem:[%s1] sm:$0x1]
    %v276 = vlaneseq
    %v277 = vshrl.u32 %v276, 7
    %v278 = vsub.s32 0, %v277
    %v279 = vrot.slane %v274, %v278
    %v281 = vmul.f32 %v18, %v279
    %v282 = vmul.f32 %v19, %v279
    %v283 = vmul.f32 %v20, %v279
    %v284 = vmul.f32 %v21, %v279
    %v285 = vmul.f32 %v22, %v279
    %v286 = vmul.f32 %v23, %v279
    %v287 = vmul.f32 %v24, %v279
    %v288 = vmul.f32 %v25, %v279
    %v289 = vmul.f32 %v26, %v279
    %v290 = vmul.f32 %v27, %v279
    %v291 = vmul.f32 %v28, %v279
    %v292 = vmul.f32 %v29, %v279
    %v293 = vmul.f32 %v30, %v279
    %v294 = vmul.f32 %v31, %v279
    %v295 = vmul.f32 %v32, %v279
    %v296 = vmul.f32 %v33, %v279
    %v297 = vmul.f32 %v34, %v279
    %v298 = vmul.f32 %v35, %v279
    %v299 = vmul.f32 %v36, %v279
    %v300 = vmul.f32 %v37, %v279
    %v301 = vmul.f32 %v38, %v279
    %v302 = vmul.f32 %v39, %v279
    %v303 = vmul.f32 %v40, %v279
    %v304 = vmul.f32 %v41, %v279
    %v305 = vmul.f32 %v42, %v279
    %v306 = vmul.f32 %v43, %v279
    %v307 = vmul.f32 %v44, %v279
    %v308 = vmul.f32 %v45, %v279
    %v309 = vmul.f32 %v46, %v279
    %v310 = vmul.f32 %v47, %v279
    %v311 = vmul.f32 %v48, %v279
    %v312 = vmul.f32 %v49, %v279
    %v313 = vmul.f32 %v50, %v279
    %v314 = vmul.f32 %v51, %v279
    %v315 = vmul.f32 %v52, %v279
    %v316 = vmul.f32 %v53, %v279
    %v317 = vmul.f32 %v54, %v279
    %v318 = vmul.f32 %v55, %v279
    %v319 = vmul.f32 %v56, %v279
    %v320 = vmul.f32 %v57, %v279
    %v321 = vmul.f32 %v58, %v279
    %v322 = vmul.f32 %v59, %v279
    %v323 = vmul.f32 %v60, %v279
    %v324 = vmul.f32 %v61, %v279
    %v325 = vmul.f32 %v62, %v279
    %v326 = vmul.f32 %v63, %v279
    %v327 = vmul.f32 %v64, %v279
    %v328 = vmul.f32 %v65, %v279
    %v329 = vmul.f32 %v66, %v279
    %v330 = vmul.f32 %v67, %v279
    %v331 = vmul.f32 %v68, %v279
    %v332 = vmul.f32 %v69, %v279
    %v333 = vmul.f32 %v70, %v279
    %v334 = vmul.f32 %v71, %v279
    %v335 = vmul.f32 %v72, %v279
    %v336 = vmul.f32 %v73, %v279
    %v337 = vmul.f32 %v74, %v279
    %v338 = vmul.f32 %v75, %v279
    %v339 = vmul.f32 %v76, %v279
    %v340 = vmul.f32 %v77, %v279
    %v341 = vmul.f32 %v78, %v279
    %v342 = vmul.f32 %v79, %v279
    %v343 = vmul.f32 %v80, %v279
    %v344 = vmul.f32 %v81, %v279
    %v345 = vmul.f32 %v82, %v279
    %v346 = vmul.f32 %v83, %v279
    %v347 = vmul.f32 %v84, %v279
    %v348 = vmul.f32 %v85, %v279
    %v349 = vmul.f32 %v86, %v279
    %v350 = vmul.f32 %v87, %v279
    %v351 = vmul.f32 %v88, %v279
    %v352 = vmul.f32 %v89, %v279
    %v353 = vmul.f32 %v90, %v279
    %v354 = vmul.f32 %v91, %v279
    %v355 = vmul.f32 %v92, %v279
    %v356 = vmul.f32 %v93, %v279
    %v357 = vmul.f32 %v94, %v279
    %v358 = vmul.f32 %v95, %v279
    %v359 = vmul.f32 %v96, %v279
    %v360 = vmul.f32 %v97, %v279
    %v361 = vmul.f32 %v98, %v279
    %v362 = vmul.f32 %v99, %v279
    %v363 = vmul.f32 %v100, %v279
    %v364 = vmul.f32 %v101, %v279
    %v365 = vmul.f32 %v102, %v279
    %v366 = vmul.f32 %v103, %v279
    %v367 = vmul.f32 %v104, %v279
    %v368 = vmul.f32 %v105, %v279
    %v369 = vmul.f32 %v106, %v279
    %v370 = vmul.f32 %v107, %v279
    %v371 = vmul.f32 %v108, %v279
    %v372 = vmul.f32 %v109, %v279
    %v373 = vmul.f32 %v110, %v279
    %v374 = vmul.f32 %v111, %v279
    %v375 = vmul.f32 %v112, %v279
    %v376 = vmul.f32 %v113, %v279
    %v377 = vmul.f32 %v114, %v279
    %v378 = vmul.f32 %v115, %v279
    %v379 = vmul.f32 %v116, %v279
    %v380 = vmul.f32 %v117, %v279
    %v381 = vmul.f32 %v118, %v279
    %v382 = vmul.f32 %v119, %v279
    %v383 = vmul.f32 %v120, %v279
    %v384 = vmul.f32 %v121, %v279
    %v385 = vmul.f32 %v122, %v279
    %v386 = vmul.f32 %v123, %v279
    %v387 = vmul.f32 %v124, %v279
    %v388 = vmul.f32 %v125, %v279
    %v389 = vmul.f32 %v126, %v279
    %v390 = vmul.f32 %v127, %v279
    %v391 = vmul.f32 %v128, %v279
    %v392 = vmul.f32 %v129, %v279
    %v393 = vmul.f32 %v130, %v279
    %v394 = vmul.f32 %v131, %v279
    %v395 = vmul.f32 %v132, %v279
    %v396 = vmul.f32 %v133, %v279
    %v397 = vmul.f32 %v134, %v279
    %v398 = vmul.f32 %v135, %v279
    %v399 = vmul.f32 %v136, %v279
    %v400 = vmul.f32 %v137, %v279
    %v401 = vmul.f32 %v138, %v279
    %v402 = vmul.f32 %v139, %v279
    %v403 = vmul.f32 %v140, %v279
    %v404 = vmul.f32 %v141, %v279
    %v405 = vmul.f32 %v142, %v279
    %v406 = vmul.f32 %v143, %v279
    %v407 = vmul.f32 %v144, %v279
    %v408 = vmul.f32 %v145, %v279
    %v409 = vmul.f32 %v146, %v279
    %v410 = vmul.f32 %v147, %v279
    %v411 = vmul.f32 %v148, %v279
    %v412 = vmul.f32 %v149, %v279
    %v413 = vmul.f32 %v150, %v279
    %v414 = vmul.f32 %v151, %v279
    %v415 = vmul.f32 %v152, %v279
    %v416 = vmul.f32 %v153, %v279
    %v417 = vmul.f32 %v154, %v279
    %v418 = vmul.f32 %v155, %v279
    %v419 = vmul.f32 %v156, %v279
    %v420 = vmul.f32 %v157, %v279
    %v421 = vmul.f32 %v158, %v279
    %v422 = vmul.f32 %v159, %v279
    %v423 = vmul.f32 %v160, %v279
    %v424 = vmul.f32 %v161, %v279
    %v425 = vmul.f32 %v162, %v279
    %v426 = vmul.f32 %v163, %v279
    %v427 = vmul.f32 %v164, %v279
    %v428 = vmul.f32 %v165, %v279
    %v429 = vmul.f32 %v166, %v279
    %v430 = vmul.f32 %v167, %v279
    %v431 = vmul.f32 %v168, %v279
    %v432 = vmul.f32 %v169, %v279
    %v433 = vmul.f32 %v170, %v279
    %v434 = vmul.f32 %v171, %v279
    %v435 = vmul.f32 %v172, %v279
    %v436 = vmul.f32 %v173, %v279
    %v437 = vmul.f32 %v174, %v279
    %v438 = vmul.f32 %v175, %v279
    %v439 = vmul.f32 %v176, %v279
    %v440 = vmul.f32 %v177, %v279
    %v441 = vmul.f32 %v178, %v279
    %v442 = vmul.f32 %v179, %v279
    %v443 = vmul.f32 %v180, %v279
    %v444 = vmul.f32 %v181, %v279
    %v445 = vmul.f32 %v182, %v279
    %v446 = vmul.f32 %v183, %v279
    %v447 = vmul.f32 %v184, %v279
    %v448 = vmul.f32 %v185, %v279
    %v449 = vmul.f32 %v186, %v279
    %v450 = vmul.f32 %v187, %v279
    %v451 = vmul.f32 %v188, %v279
    %v452 = vmul.f32 %v189, %v279
    %v453 = vmul.f32 %v190, %v279
    %v454 = vmul.f32 %v191, %v279
    %v455 = vmul.f32 %v192, %v279
    %v456 = vmul.f32 %v193, %v279
    %v457 = vmul.f32 %v194, %v279
    %v458 = vmul.f32 %v195, %v279
    %v459 = vmul.f32 %v196, %v279
    %v460 = vmul.f32 %v197, %v279
    %v461 = vmul.f32 %v198, %v279
    %v462 = vmul.f32 %v199, %v279
    %v463 = vmul.f32 %v200, %v279
    %v464 = vmul.f32 %v201, %v279
    %v465 = vmul.f32 %v202, %v279
    %v466 = vmul.f32 %v203, %v279
    %v467 = vmul.f32 %v204, %v279
    %v468 = vmul.f32 %v205, %v279
    %v469 = vmul.f32 %v206, %v279
    %v470 = vmul.f32 %v207, %v279
    %v471 = vmul.f32 %v208, %v279
    %v472 = vmul.f32 %v209, %v279
    %v473 = vmul.f32 %v210, %v279
    %v474 = vmul.f32 %v211, %v279
    %v475 = vmul.f32 %v212, %v279
    %v476 = vmul.f32 %v213, %v279
    %v477 = vmul.f32 %v214, %v279
    %v478 = vmul.f32 %v215, %v279
    %v479 = vmul.f32 %v216, %v279
    %v480 = vmul.f32 %v217, %v279
    %v481 = vmul.f32 %v218, %v279
    %v482 = vmul.f32 %v219, %v279
    %v483 = vmul.f32 %v220, %v279
    %v484 = vmul.f32 %v221, %v279
    %v485 = vmul.f32 %v222, %v279
    %v486 = vmul.f32 %v223, %v279
    %v487 = vmul.f32 %v224, %v279
    %v488 = vmul.f32 %v225, %v279
    %v489 = vmul.f32 %v226, %v279
    %v490 = vmul.f32 %v227, %v279
    %v491 = vmul.f32 %v228, %v279
    %v492 = vmul.f32 %v229, %v279
    %v493 = vmul.f32 %v230, %v279
    %v494 = vmul.f32 %v231, %v279
    %v495 = vmul.f32 %v232, %v279
    %v496 = vmul.f32 %v233, %v279
    %v497 = vmul.f32 %v234, %v279
    %v498 = vmul.f32 %v235, %v279
    %v499 = vmul.f32 %v236, %v279
    %v500 = vmul.f32 %v237, %v279
    %v501 = vmul.f32 %v238, %v279
    %v502 = vmul.f32 %v239, %v279
    %v503 = vmul.f32 %v240, %v279
    %v504 = vmul.f32 %v241, %v279
    %v505 = vmul.f32 %v242, %v279
    %v506 = vmul.f32 %v243, %v279
    %v507 = vmul.f32 %v244, %v279
    %v508 = vmul.f32 %v245, %v279
    %v509 = vmul.f32 %v246, %v279
    %v510 = vmul.f32 %v247, %v279
    %v511 = vmul.f32 %v248, %v279
    %v512 = vmul.f32 %v249, %v279
    %v513 = vmul.f32 %v250, %v279
    %v514 = vmul.f32 %v251, %v279
    %v515 = vmul.f32 %v252, %v279
    %v516 = vmul.f32 %v253, %v279
    %v517 = vmul.f32 %v254, %v279
    %v518 = vmul.f32 %v255, %v279
    %v519 = vmul.f32 %v256, %v279
    %v520 = vmul.f32 %v257, %v279
    %v521 = vmul.f32 %v258, %v279
    %v522 = vmul.f32 %v259, %v279
    %v523 = vmul.f32 %v260, %v279
    %v524 = vmul.f32 %v261, %v279
    %v525 = vmul.f32 %v262, %v279
    %v526 = vmul.f32 %v263, %v279
    %v527 = vmul.f32 %v264, %v279
    %v528 = vmul.f32 %v265, %v279
    %v529 = vmul.f32 %v266, %v279
    %v530 = vmul.f32 %v267, %v279
    %v531 = vmul.f32 %v268, %v279
    %v532 = vmul.f32 %v269, %v279
    %v533 = vmul.f32 %v270, %v279
    %v534 = vmul.f32 %v271, %v279
    %v535 = vmul.f32 %v272, %v279
    %v536 = vmul.f32 %v273, %v279
    %vm537 = vcmask 523264
    %v538 = vsel %vm537, %v281, 0.0
    %539 = vadd.xlane.f32.xlu0 %v538
    %v540 = vpop.xlane.xlu0 %539
    %v541 = vsel %vm537, %v282, 0.0
    %542 = vadd.xlane.f32.xlu0 %v541
    %v543 = vpop.xlane.xlu0 %542
    %v544 = vsel %vm537, %v283, 0.0
    %545 = vadd.xlane.f32.xlu0 %v544
    %v546 = vpop.xlane.xlu0 %545
    %v547 = vsel %vm537, %v284, 0.0
    %548 = vadd.xlane.f32.xlu0 %v547
    %v549 = vpop.xlane.xlu0 %548
    %v550 = vsel %vm537, %v285, 0.0
    %551 = vadd.xlane.f32.xlu0 %v550
    %v552 = vpop.xlane.xlu0 %551
    %v553 = vsel %vm537, %v286, 0.0
    %554 = vadd.xlane.f32.xlu0 %v553
    %v555 = vpop.xlane.xlu0 %554
    %v556 = vsel %vm537, %v287, 0.0
    %557 = vadd.xlane.f32.xlu0 %v556
    %v558 = vpop.xlane.xlu0 %557
    %v559 = vsel %vm537, %v288, 0.0
    %560 = vadd.xlane.f32.xlu0 %v559
    %v561 = vpop.xlane.xlu0 %560
    %v562 = vsel %vm537, %v289, 0.0
    %563 = vadd.xlane.f32.xlu0 %v562
    %v564 = vpop.xlane.xlu0 %563
    %v565 = vsel %vm537, %v290, 0.0
    %566 = vadd.xlane.f32.xlu0 %v565
    %v567 = vpop.xlane.xlu0 %566
    %v568 = vsel %vm537, %v291, 0.0
    %569 = vadd.xlane.f32.xlu0 %v568
    %v570 = vpop.xlane.xlu0 %569
    %v571 = vsel %vm537, %v292, 0.0
    %572 = vadd.xlane.f32.xlu0 %v571
    %v573 = vpop.xlane.xlu0 %572
    %v574 = vsel %vm537, %v293, 0.0
    %575 = vadd.xlane.f32.xlu0 %v574
    %v576 = vpop.xlane.xlu0 %575
    %v577 = vsel %vm537, %v294, 0.0
    %578 = vadd.xlane.f32.xlu0 %v577
    %v579 = vpop.xlane.xlu0 %578
    %v580 = vsel %vm537, %v295, 0.0
    %581 = vadd.xlane.f32.xlu0 %v580
    %v582 = vpop.xlane.xlu0 %581
    %v583 = vsel %vm537, %v296, 0.0
    %584 = vadd.xlane.f32.xlu0 %v583
    %v585 = vpop.xlane.xlu0 %584
    %v586 = vsel %vm537, %v297, 0.0
    %587 = vadd.xlane.f32.xlu0 %v586
    %v588 = vpop.xlane.xlu0 %587
    %v589 = vsel %vm537, %v298, 0.0
    %590 = vadd.xlane.f32.xlu0 %v589
    %v591 = vpop.xlane.xlu0 %590
    %v592 = vsel %vm537, %v299, 0.0
    %593 = vadd.xlane.f32.xlu0 %v592
    %v594 = vpop.xlane.xlu0 %593
    %v595 = vsel %vm537, %v300, 0.0
    %596 = vadd.xlane.f32.xlu0 %v595
    %v597 = vpop.xlane.xlu0 %596
    %v598 = vsel %vm537, %v301, 0.0
    %599 = vadd.xlane.f32.xlu0 %v598
    %v600 = vpop.xlane.xlu0 %599
    %v601 = vsel %vm537, %v302, 0.0
    %602 = vadd.xlane.f32.xlu0 %v601
    %v603 = vpop.xlane.xlu0 %602
    %v604 = vsel %vm537, %v303, 0.0
    %605 = vadd.xlane.f32.xlu0 %v604
    %v606 = vpop.xlane.xlu0 %605
    %v607 = vsel %vm537, %v304, 0.0
    %608 = vadd.xlane.f32.xlu0 %v607
    %v609 = vpop.xlane.xlu0 %608
    %v610 = vsel %vm537, %v305, 0.0
    %611 = vadd.xlane.f32.xlu0 %v610
    %v612 = vpop.xlane.xlu0 %611
    %v613 = vsel %vm537, %v306, 0.0
    %614 = vadd.xlane.f32.xlu0 %v613
    %v615 = vpop.xlane.xlu0 %614
    %v616 = vsel %vm537, %v307, 0.0
    %617 = vadd.xlane.f32.xlu0 %v616
    %v618 = vpop.xlane.xlu0 %617
    %v619 = vsel %vm537, %v308, 0.0
    %620 = vadd.xlane.f32.xlu0 %v619
    %v621 = vpop.xlane.xlu0 %620
    %v622 = vsel %vm537, %v309, 0.0
    %623 = vadd.xlane.f32.xlu0 %v622
    %v624 = vpop.xlane.xlu0 %623
    %v625 = vsel %vm537, %v310, 0.0
    %626 = vadd.xlane.f32.xlu0 %v625
    %v627 = vpop.xlane.xlu0 %626
    %v628 = vsel %vm537, %v311, 0.0
    %629 = vadd.xlane.f32.xlu0 %v628
    %v630 = vpop.xlane.xlu0 %629
    %v631 = vsel %vm537, %v312, 0.0
    %632 = vadd.xlane.f32.xlu0 %v631
    %v633 = vpop.xlane.xlu0 %632
    %v634 = vsel %vm537, %v313, 0.0
    %635 = vadd.xlane.f32.xlu0 %v634
    %v636 = vpop.xlane.xlu0 %635
    %v637 = vsel %vm537, %v314, 0.0
    %638 = vadd.xlane.f32.xlu0 %v637
    %v639 = vpop.xlane.xlu0 %638
    %v640 = vsel %vm537, %v315, 0.0
    %641 = vadd.xlane.f32.xlu0 %v640
    %v642 = vpop.xlane.xlu0 %641
    %v643 = vsel %vm537, %v316, 0.0
    %644 = vadd.xlane.f32.xlu0 %v643
    %v645 = vpop.xlane.xlu0 %644
    %v646 = vsel %vm537, %v317, 0.0
    %647 = vadd.xlane.f32.xlu0 %v646
    %v648 = vpop.xlane.xlu0 %647
    %v649 = vsel %vm537, %v318, 0.0
    %650 = vadd.xlane.f32.xlu0 %v649
    %v651 = vpop.xlane.xlu0 %650
    %v652 = vsel %vm537, %v319, 0.0
    %653 = vadd.xlane.f32.xlu0 %v652
    %v654 = vpop.xlane.xlu0 %653
    %v655 = vsel %vm537, %v320, 0.0
    %656 = vadd.xlane.f32.xlu0 %v655
    %v657 = vpop.xlane.xlu0 %656
    %v658 = vsel %vm537, %v321, 0.0
    %659 = vadd.xlane.f32.xlu0 %v658
    %v660 = vpop.xlane.xlu0 %659
    %v661 = vsel %vm537, %v322, 0.0
    %662 = vadd.xlane.f32.xlu0 %v661
    %v663 = vpop.xlane.xlu0 %662
    %v664 = vsel %vm537, %v323, 0.0
    %665 = vadd.xlane.f32.xlu0 %v664
    %v666 = vpop.xlane.xlu0 %665
    %v667 = vsel %vm537, %v324, 0.0
    %668 = vadd.xlane.f32.xlu0 %v667
    %v669 = vpop.xlane.xlu0 %668
    %v670 = vsel %vm537, %v325, 0.0
    %671 = vadd.xlane.f32.xlu0 %v670
    %v672 = vpop.xlane.xlu0 %671
    %v673 = vsel %vm537, %v326, 0.0
    %674 = vadd.xlane.f32.xlu0 %v673
    %v675 = vpop.xlane.xlu0 %674
    %v676 = vsel %vm537, %v327, 0.0
    %677 = vadd.xlane.f32.xlu0 %v676
    %v678 = vpop.xlane.xlu0 %677
    %v679 = vsel %vm537, %v328, 0.0
    %680 = vadd.xlane.f32.xlu0 %v679
    %v681 = vpop.xlane.xlu0 %680
    %v682 = vsel %vm537, %v329, 0.0
    %683 = vadd.xlane.f32.xlu0 %v682
    %v684 = vpop.xlane.xlu0 %683
    %v685 = vsel %vm537, %v330, 0.0
    %686 = vadd.xlane.f32.xlu0 %v685
    %v687 = vpop.xlane.xlu0 %686
    %v688 = vsel %vm537, %v331, 0.0
    %689 = vadd.xlane.f32.xlu0 %v688
    %v690 = vpop.xlane.xlu0 %689
    %v691 = vsel %vm537, %v332, 0.0
    %692 = vadd.xlane.f32.xlu0 %v691
    %v693 = vpop.xlane.xlu0 %692
    %v694 = vsel %vm537, %v333, 0.0
    %695 = vadd.xlane.f32.xlu0 %v694
    %v696 = vpop.xlane.xlu0 %695
    %v697 = vsel %vm537, %v334, 0.0
    %698 = vadd.xlane.f32.xlu0 %v697
    %v699 = vpop.xlane.xlu0 %698
    %v700 = vsel %vm537, %v335, 0.0
    %701 = vadd.xlane.f32.xlu0 %v700
    %v702 = vpop.xlane.xlu0 %701
    %v703 = vsel %vm537, %v336, 0.0
    %704 = vadd.xlane.f32.xlu0 %v703
    %v705 = vpop.xlane.xlu0 %704
    %v706 = vsel %vm537, %v337, 0.0
    %707 = vadd.xlane.f32.xlu0 %v706
    %v708 = vpop.xlane.xlu0 %707
    %v709 = vsel %vm537, %v338, 0.0
    %710 = vadd.xlane.f32.xlu0 %v709
    %v711 = vpop.xlane.xlu0 %710
    %v712 = vsel %vm537, %v339, 0.0
    %713 = vadd.xlane.f32.xlu0 %v712
    %v714 = vpop.xlane.xlu0 %713
    %v715 = vsel %vm537, %v340, 0.0
    %716 = vadd.xlane.f32.xlu0 %v715
    %v717 = vpop.xlane.xlu0 %716
    %v718 = vsel %vm537, %v341, 0.0
    %719 = vadd.xlane.f32.xlu0 %v718
    %v720 = vpop.xlane.xlu0 %719
    %v721 = vsel %vm537, %v342, 0.0
    %722 = vadd.xlane.f32.xlu0 %v721
    %v723 = vpop.xlane.xlu0 %722
    %v724 = vsel %vm537, %v343, 0.0
    %725 = vadd.xlane.f32.xlu0 %v724
    %v726 = vpop.xlane.xlu0 %725
    %v727 = vsel %vm537, %v344, 0.0
    %728 = vadd.xlane.f32.xlu0 %v727
    %v729 = vpop.xlane.xlu0 %728
    %v730 = vsel %vm537, %v345, 0.0
    %731 = vadd.xlane.f32.xlu0 %v730
    %v732 = vpop.xlane.xlu0 %731
    %v733 = vsel %vm537, %v346, 0.0
    %734 = vadd.xlane.f32.xlu0 %v733
    %v735 = vpop.xlane.xlu0 %734
    %v736 = vsel %vm537, %v347, 0.0
    %737 = vadd.xlane.f32.xlu0 %v736
    %v738 = vpop.xlane.xlu0 %737
    %v739 = vsel %vm537, %v348, 0.0
    %740 = vadd.xlane.f32.xlu0 %v739
    %v741 = vpop.xlane.xlu0 %740
    %v742 = vsel %vm537, %v349, 0.0
    %743 = vadd.xlane.f32.xlu0 %v742
    %v744 = vpop.xlane.xlu0 %743
    %v745 = vsel %vm537, %v350, 0.0
    %746 = vadd.xlane.f32.xlu0 %v745
    %v747 = vpop.xlane.xlu0 %746
    %v748 = vsel %vm537, %v351, 0.0
    %749 = vadd.xlane.f32.xlu0 %v748
    %v750 = vpop.xlane.xlu0 %749
    %v751 = vsel %vm537, %v352, 0.0
    %752 = vadd.xlane.f32.xlu0 %v751
    %v753 = vpop.xlane.xlu0 %752
    %v754 = vsel %vm537, %v353, 0.0
    %755 = vadd.xlane.f32.xlu0 %v754
    %v756 = vpop.xlane.xlu0 %755
    %v757 = vsel %vm537, %v354, 0.0
    %758 = vadd.xlane.f32.xlu0 %v757
    %v759 = vpop.xlane.xlu0 %758
    %v760 = vsel %vm537, %v355, 0.0
    %761 = vadd.xlane.f32.xlu0 %v760
    %v762 = vpop.xlane.xlu0 %761
    %v763 = vsel %vm537, %v356, 0.0
    %764 = vadd.xlane.f32.xlu0 %v763
    %v765 = vpop.xlane.xlu0 %764
    %v766 = vsel %vm537, %v357, 0.0
    %767 = vadd.xlane.f32.xlu0 %v766
    %v768 = vpop.xlane.xlu0 %767
    %v769 = vsel %vm537, %v358, 0.0
    %770 = vadd.xlane.f32.xlu0 %v769
    %v771 = vpop.xlane.xlu0 %770
    %v772 = vsel %vm537, %v359, 0.0
    %773 = vadd.xlane.f32.xlu0 %v772
    %v774 = vpop.xlane.xlu0 %773
    %v775 = vsel %vm537, %v360, 0.0
    %776 = vadd.xlane.f32.xlu0 %v775
    %v777 = vpop.xlane.xlu0 %776
    %v778 = vsel %vm537, %v361, 0.0
    %779 = vadd.xlane.f32.xlu0 %v778
    %v780 = vpop.xlane.xlu0 %779
    %v781 = vsel %vm537, %v362, 0.0
    %782 = vadd.xlane.f32.xlu0 %v781
    %v783 = vpop.xlane.xlu0 %782
    %v784 = vsel %vm537, %v363, 0.0
    %785 = vadd.xlane.f32.xlu0 %v784
    %v786 = vpop.xlane.xlu0 %785
    %v787 = vsel %vm537, %v364, 0.0
    %788 = vadd.xlane.f32.xlu0 %v787
    %v789 = vpop.xlane.xlu0 %788
    %v790 = vsel %vm537, %v365, 0.0
    %791 = vadd.xlane.f32.xlu0 %v790
    %v792 = vpop.xlane.xlu0 %791
    %v793 = vsel %vm537, %v366, 0.0
    %794 = vadd.xlane.f32.xlu0 %v793
    %v795 = vpop.xlane.xlu0 %794
    %v796 = vsel %vm537, %v367, 0.0
    %797 = vadd.xlane.f32.xlu0 %v796
    %v798 = vpop.xlane.xlu0 %797
    %v799 = vsel %vm537, %v368, 0.0
    %800 = vadd.xlane.f32.xlu0 %v799
    %v801 = vpop.xlane.xlu0 %800
    %v802 = vsel %vm537, %v369, 0.0
    %803 = vadd.xlane.f32.xlu0 %v802
    %v804 = vpop.xlane.xlu0 %803
    %v805 = vsel %vm537, %v370, 0.0
    %806 = vadd.xlane.f32.xlu0 %v805
    %v807 = vpop.xlane.xlu0 %806
    %v808 = vsel %vm537, %v371, 0.0
    %809 = vadd.xlane.f32.xlu0 %v808
    %v810 = vpop.xlane.xlu0 %809
    %v811 = vsel %vm537, %v372, 0.0
    %812 = vadd.xlane.f32.xlu0 %v811
    %v813 = vpop.xlane.xlu0 %812
    %v814 = vsel %vm537, %v373, 0.0
    %815 = vadd.xlane.f32.xlu0 %v814
    %v816 = vpop.xlane.xlu0 %815
    %v817 = vsel %vm537, %v374, 0.0
    %818 = vadd.xlane.f32.xlu0 %v817
    %v819 = vpop.xlane.xlu0 %818
    %v820 = vsel %vm537, %v375, 0.0
    %821 = vadd.xlane.f32.xlu0 %v820
    %v822 = vpop.xlane.xlu0 %821
    %v823 = vsel %vm537, %v376, 0.0
    %824 = vadd.xlane.f32.xlu0 %v823
    %v825 = vpop.xlane.xlu0 %824
    %v826 = vsel %vm537, %v377, 0.0
    %827 = vadd.xlane.f32.xlu0 %v826
    %v828 = vpop.xlane.xlu0 %827
    %v829 = vsel %vm537, %v378, 0.0
    %830 = vadd.xlane.f32.xlu0 %v829
    %v831 = vpop.xlane.xlu0 %830
    %v832 = vsel %vm537, %v379, 0.0
    %833 = vadd.xlane.f32.xlu0 %v832
    %v834 = vpop.xlane.xlu0 %833
    %v835 = vsel %vm537, %v380, 0.0
    %836 = vadd.xlane.f32.xlu0 %v835
    %v837 = vpop.xlane.xlu0 %836
    %v838 = vsel %vm537, %v381, 0.0
    %839 = vadd.xlane.f32.xlu0 %v838
    %v840 = vpop.xlane.xlu0 %839
    %v841 = vsel %vm537, %v382, 0.0
    %842 = vadd.xlane.f32.xlu0 %v841
    %v843 = vpop.xlane.xlu0 %842
    %v844 = vsel %vm537, %v383, 0.0
    %845 = vadd.xlane.f32.xlu0 %v844
    %v846 = vpop.xlane.xlu0 %845
    %v847 = vsel %vm537, %v384, 0.0
    %848 = vadd.xlane.f32.xlu0 %v847
    %v849 = vpop.xlane.xlu0 %848
    %v850 = vsel %vm537, %v385, 0.0
    %851 = vadd.xlane.f32.xlu0 %v850
    %v852 = vpop.xlane.xlu0 %851
    %v853 = vsel %vm537, %v386, 0.0
    %854 = vadd.xlane.f32.xlu0 %v853
    %v855 = vpop.xlane.xlu0 %854
    %v856 = vsel %vm537, %v387, 0.0
    %857 = vadd.xlane.f32.xlu0 %v856
    %v858 = vpop.xlane.xlu0 %857
    %v859 = vsel %vm537, %v388, 0.0
    %860 = vadd.xlane.f32.xlu0 %v859
    %v861 = vpop.xlane.xlu0 %860
    %v862 = vsel %vm537, %v389, 0.0
    %863 = vadd.xlane.f32.xlu0 %v862
    %v864 = vpop.xlane.xlu0 %863
    %v865 = vsel %vm537, %v390, 0.0
    %866 = vadd.xlane.f32.xlu0 %v865
    %v867 = vpop.xlane.xlu0 %866
    %v868 = vsel %vm537, %v391, 0.0
    %869 = vadd.xlane.f32.xlu0 %v868
    %v870 = vpop.xlane.xlu0 %869
    %v871 = vsel %vm537, %v392, 0.0
    %872 = vadd.xlane.f32.xlu0 %v871
    %v873 = vpop.xlane.xlu0 %872
    %v874 = vsel %vm537, %v393, 0.0
    %875 = vadd.xlane.f32.xlu0 %v874
    %v876 = vpop.xlane.xlu0 %875
    %v877 = vsel %vm537, %v394, 0.0
    %878 = vadd.xlane.f32.xlu0 %v877
    %v879 = vpop.xlane.xlu0 %878
    %v880 = vsel %vm537, %v395, 0.0
    %881 = vadd.xlane.f32.xlu0 %v880
    %v882 = vpop.xlane.xlu0 %881
    %v883 = vsel %vm537, %v396, 0.0
    %884 = vadd.xlane.f32.xlu0 %v883
    %v885 = vpop.xlane.xlu0 %884
    %v886 = vsel %vm537, %v397, 0.0
    %887 = vadd.xlane.f32.xlu0 %v886
    %v888 = vpop.xlane.xlu0 %887
    %v889 = vsel %vm537, %v398, 0.0
    %890 = vadd.xlane.f32.xlu0 %v889
    %v891 = vpop.xlane.xlu0 %890
    %v892 = vsel %vm537, %v399, 0.0
    %893 = vadd.xlane.f32.xlu0 %v892
    %v894 = vpop.xlane.xlu0 %893
    %v895 = vsel %vm537, %v400, 0.0
    %896 = vadd.xlane.f32.xlu0 %v895
    %v897 = vpop.xlane.xlu0 %896
    %v898 = vsel %vm537, %v401, 0.0
    %899 = vadd.xlane.f32.xlu0 %v898
    %v900 = vpop.xlane.xlu0 %899
    %v901 = vsel %vm537, %v402, 0.0
    %902 = vadd.xlane.f32.xlu0 %v901
    %v903 = vpop.xlane.xlu0 %902
    %v904 = vsel %vm537, %v403, 0.0
    %905 = vadd.xlane.f32.xlu0 %v904
    %v906 = vpop.xlane.xlu0 %905
    %v907 = vsel %vm537, %v404, 0.0
    %908 = vadd.xlane.f32.xlu0 %v907
    %v909 = vpop.xlane.xlu0 %908
    %v910 = vsel %vm537, %v405, 0.0
    %911 = vadd.xlane.f32.xlu0 %v910
    %v912 = vpop.xlane.xlu0 %911
    %v913 = vsel %vm537, %v406, 0.0
    %914 = vadd.xlane.f32.xlu0 %v913
    %v915 = vpop.xlane.xlu0 %914
    %v916 = vsel %vm537, %v407, 0.0
    %917 = vadd.xlane.f32.xlu0 %v916
    %v918 = vpop.xlane.xlu0 %917
    %v919 = vsel %vm537, %v408, 0.0
    %920 = vadd.xlane.f32.xlu0 %v919
    %v921 = vpop.xlane.xlu0 %920
    %v922 = vsel %vm537, %v409, 0.0
    %923 = vadd.xlane.f32.xlu0 %v922
    %v924 = vpop.xlane.xlu0 %923
    %v925 = vsel %vm537, %v410, 0.0
    %926 = vadd.xlane.f32.xlu0 %v925
    %v927 = vpop.xlane.xlu0 %926
    %v928 = vsel %vm537, %v411, 0.0
    %929 = vadd.xlane.f32.xlu0 %v928
    %v930 = vpop.xlane.xlu0 %929
    %v931 = vsel %vm537, %v412, 0.0
    %932 = vadd.xlane.f32.xlu0 %v931
    %v933 = vpop.xlane.xlu0 %932
    %v934 = vsel %vm537, %v413, 0.0
    %935 = vadd.xlane.f32.xlu0 %v934
    %v936 = vpop.xlane.xlu0 %935
    %v937 = vsel %vm537, %v414, 0.0
    %938 = vadd.xlane.f32.xlu0 %v937
    %v939 = vpop.xlane.xlu0 %938
    %v940 = vsel %vm537, %v415, 0.0
    %941 = vadd.xlane.f32.xlu0 %v940
    %v942 = vpop.xlane.xlu0 %941
    %v943 = vsel %vm537, %v416, 0.0
    %944 = vadd.xlane.f32.xlu0 %v943
    %v945 = vpop.xlane.xlu0 %944
    %v946 = vsel %vm537, %v417, 0.0
    %947 = vadd.xlane.f32.xlu0 %v946
    %v948 = vpop.xlane.xlu0 %947
    %v949 = vsel %vm537, %v418, 0.0
    %950 = vadd.xlane.f32.xlu0 %v949
    %v951 = vpop.xlane.xlu0 %950
    %v952 = vsel %vm537, %v419, 0.0
    %953 = vadd.xlane.f32.xlu0 %v952
    %v954 = vpop.xlane.xlu0 %953
    %v955 = vsel %vm537, %v420, 0.0
    %956 = vadd.xlane.f32.xlu0 %v955
    %v957 = vpop.xlane.xlu0 %956
    %v958 = vsel %vm537, %v421, 0.0
    %959 = vadd.xlane.f32.xlu0 %v958
    %v960 = vpop.xlane.xlu0 %959
    %v961 = vsel %vm537, %v422, 0.0
    %962 = vadd.xlane.f32.xlu0 %v961
    %v963 = vpop.xlane.xlu0 %962
    %v964 = vsel %vm537, %v423, 0.0
    %965 = vadd.xlane.f32.xlu0 %v964
    %v966 = vpop.xlane.xlu0 %965
    %v967 = vsel %vm537, %v424, 0.0
    %968 = vadd.xlane.f32.xlu0 %v967
    %v969 = vpop.xlane.xlu0 %968
    %v970 = vsel %vm537, %v425, 0.0
    %971 = vadd.xlane.f32.xlu0 %v970
    %v972 = vpop.xlane.xlu0 %971
    %v973 = vsel %vm537, %v426, 0.0
    %974 = vadd.xlane.f32.xlu0 %v973
    %v975 = vpop.xlane.xlu0 %974
    %v976 = vsel %vm537, %v427, 0.0
    %977 = vadd.xlane.f32.xlu0 %v976
    %v978 = vpop.xlane.xlu0 %977
    %v979 = vsel %vm537, %v428, 0.0
    %980 = vadd.xlane.f32.xlu0 %v979
    %v981 = vpop.xlane.xlu0 %980
    %v982 = vsel %vm537, %v429, 0.0
    %983 = vadd.xlane.f32.xlu0 %v982
    %v984 = vpop.xlane.xlu0 %983
    %v985 = vsel %vm537, %v430, 0.0
    %986 = vadd.xlane.f32.xlu0 %v985
    %v987 = vpop.xlane.xlu0 %986
    %v988 = vsel %vm537, %v431, 0.0
    %989 = vadd.xlane.f32.xlu0 %v988
    %v990 = vpop.xlane.xlu0 %989
    %v991 = vsel %vm537, %v432, 0.0
    %992 = vadd.xlane.f32.xlu0 %v991
    %v993 = vpop.xlane.xlu0 %992
    %v994 = vsel %vm537, %v433, 0.0
    %995 = vadd.xlane.f32.xlu0 %v994
    %v996 = vpop.xlane.xlu0 %995
    %v997 = vsel %vm537, %v434, 0.0
    %998 = vadd.xlane.f32.xlu0 %v997
    %v999 = vpop.xlane.xlu0 %998
    %v1000 = vsel %vm537, %v435, 0.0
    %1001 = vadd.xlane.f32.xlu0 %v1000
    %v1002 = vpop.xlane.xlu0 %1001
    %v1003 = vsel %vm537, %v436, 0.0
    %1004 = vadd.xlane.f32.xlu0 %v1003
    %v1005 = vpop.xlane.xlu0 %1004
    %v1006 = vsel %vm537, %v437, 0.0
    %1007 = vadd.xlane.f32.xlu0 %v1006
    %v1008 = vpop.xlane.xlu0 %1007
    %v1009 = vsel %vm537, %v438, 0.0
    %1010 = vadd.xlane.f32.xlu0 %v1009
    %v1011 = vpop.xlane.xlu0 %1010
    %v1012 = vsel %vm537, %v439, 0.0
    %1013 = vadd.xlane.f32.xlu0 %v1012
    %v1014 = vpop.xlane.xlu0 %1013
    %v1015 = vsel %vm537, %v440, 0.0
    %1016 = vadd.xlane.f32.xlu0 %v1015
    %v1017 = vpop.xlane.xlu0 %1016
    %v1018 = vsel %vm537, %v441, 0.0
    %1019 = vadd.xlane.f32.xlu0 %v1018
    %v1020 = vpop.xlane.xlu0 %1019
    %v1021 = vsel %vm537, %v442, 0.0
    %1022 = vadd.xlane.f32.xlu0 %v1021
    %v1023 = vpop.xlane.xlu0 %1022
    %v1024 = vsel %vm537, %v443, 0.0
    %1025 = vadd.xlane.f32.xlu0 %v1024
    %v1026 = vpop.xlane.xlu0 %1025
    %v1027 = vsel %vm537, %v444, 0.0
    %1028 = vadd.xlane.f32.xlu0 %v1027
    %v1029 = vpop.xlane.xlu0 %1028
    %v1030 = vsel %vm537, %v445, 0.0
    %1031 = vadd.xlane.f32.xlu0 %v1030
    %v1032 = vpop.xlane.xlu0 %1031
    %v1033 = vsel %vm537, %v446, 0.0
    %1034 = vadd.xlane.f32.xlu0 %v1033
    %v1035 = vpop.xlane.xlu0 %1034
    %v1036 = vsel %vm537, %v447, 0.0
    %1037 = vadd.xlane.f32.xlu0 %v1036
    %v1038 = vpop.xlane.xlu0 %1037
    %v1039 = vsel %vm537, %v448, 0.0
    %1040 = vadd.xlane.f32.xlu0 %v1039
    %v1041 = vpop.xlane.xlu0 %1040
    %v1042 = vsel %vm537, %v449, 0.0
    %1043 = vadd.xlane.f32.xlu0 %v1042
    %v1044 = vpop.xlane.xlu0 %1043
    %v1045 = vsel %vm537, %v450, 0.0
    %1046 = vadd.xlane.f32.xlu0 %v1045
    %v1047 = vpop.xlane.xlu0 %1046
    %v1048 = vsel %vm537, %v451, 0.0
    %1049 = vadd.xlane.f32.xlu0 %v1048
    %v1050 = vpop.xlane.xlu0 %1049
    %v1051 = vsel %vm537, %v452, 0.0
    %1052 = vadd.xlane.f32.xlu0 %v1051
    %v1053 = vpop.xlane.xlu0 %1052
    %v1054 = vsel %vm537, %v453, 0.0
    %1055 = vadd.xlane.f32.xlu0 %v1054
    %v1056 = vpop.xlane.xlu0 %1055
    %v1057 = vsel %vm537, %v454, 0.0
    %1058 = vadd.xlane.f32.xlu0 %v1057
    %v1059 = vpop.xlane.xlu0 %1058
    %v1060 = vsel %vm537, %v455, 0.0
    %1061 = vadd.xlane.f32.xlu0 %v1060
    %v1062 = vpop.xlane.xlu0 %1061
    %v1063 = vsel %vm537, %v456, 0.0
    %1064 = vadd.xlane.f32.xlu0 %v1063
    %v1065 = vpop.xlane.xlu0 %1064
    %v1066 = vsel %vm537, %v457, 0.0
    %1067 = vadd.xlane.f32.xlu0 %v1066
    %v1068 = vpop.xlane.xlu0 %1067
    %v1069 = vsel %vm537, %v458, 0.0
    %1070 = vadd.xlane.f32.xlu0 %v1069
    %v1071 = vpop.xlane.xlu0 %1070
    %v1072 = vsel %vm537, %v459, 0.0
    %1073 = vadd.xlane.f32.xlu0 %v1072
    %v1074 = vpop.xlane.xlu0 %1073
    %v1075 = vsel %vm537, %v460, 0.0
    %1076 = vadd.xlane.f32.xlu0 %v1075
    %v1077 = vpop.xlane.xlu0 %1076
    %v1078 = vsel %vm537, %v461, 0.0
    %1079 = vadd.xlane.f32.xlu0 %v1078
    %v1080 = vpop.xlane.xlu0 %1079
    %v1081 = vsel %vm537, %v462, 0.0
    %1082 = vadd.xlane.f32.xlu0 %v1081
    %v1083 = vpop.xlane.xlu0 %1082
    %v1084 = vsel %vm537, %v463, 0.0
    %1085 = vadd.xlane.f32.xlu0 %v1084
    %v1086 = vpop.xlane.xlu0 %1085
    %v1087 = vsel %vm537, %v464, 0.0
    %1088 = vadd.xlane.f32.xlu0 %v1087
    %v1089 = vpop.xlane.xlu0 %1088
    %v1090 = vsel %vm537, %v465, 0.0
    %1091 = vadd.xlane.f32.xlu0 %v1090
    %v1092 = vpop.xlane.xlu0 %1091
    %v1093 = vsel %vm537, %v466, 0.0
    %1094 = vadd.xlane.f32.xlu0 %v1093
    %v1095 = vpop.xlane.xlu0 %1094
    %v1096 = vsel %vm537, %v467, 0.0
    %1097 = vadd.xlane.f32.xlu0 %v1096
    %v1098 = vpop.xlane.xlu0 %1097
    %v1099 = vsel %vm537, %v468, 0.0
    %1100 = vadd.xlane.f32.xlu0 %v1099
    %v1101 = vpop.xlane.xlu0 %1100
    %v1102 = vsel %vm537, %v469, 0.0
    %1103 = vadd.xlane.f32.xlu0 %v1102
    %v1104 = vpop.xlane.xlu0 %1103
    %v1105 = vsel %vm537, %v470, 0.0
    %1106 = vadd.xlane.f32.xlu0 %v1105
    %v1107 = vpop.xlane.xlu0 %1106
    %v1108 = vsel %vm537, %v471, 0.0
    %1109 = vadd.xlane.f32.xlu0 %v1108
    %v1110 = vpop.xlane.xlu0 %1109
    %v1111 = vsel %vm537, %v472, 0.0
    %1112 = vadd.xlane.f32.xlu0 %v1111
    %v1113 = vpop.xlane.xlu0 %1112
    %v1114 = vsel %vm537, %v473, 0.0
    %1115 = vadd.xlane.f32.xlu0 %v1114
    %v1116 = vpop.xlane.xlu0 %1115
    %v1117 = vsel %vm537, %v474, 0.0
    %1118 = vadd.xlane.f32.xlu0 %v1117
    %v1119 = vpop.xlane.xlu0 %1118
    %v1120 = vsel %vm537, %v475, 0.0
    %1121 = vadd.xlane.f32.xlu0 %v1120
    %v1122 = vpop.xlane.xlu0 %1121
    %v1123 = vsel %vm537, %v476, 0.0
    %1124 = vadd.xlane.f32.xlu0 %v1123
    %v1125 = vpop.xlane.xlu0 %1124
    %v1126 = vsel %vm537, %v477, 0.0
    %1127 = vadd.xlane.f32.xlu0 %v1126
    %v1128 = vpop.xlane.xlu0 %1127
    %v1129 = vsel %vm537, %v478, 0.0
    %1130 = vadd.xlane.f32.xlu0 %v1129
    %v1131 = vpop.xlane.xlu0 %1130
    %v1132 = vsel %vm537, %v479, 0.0
    %1133 = vadd.xlane.f32.xlu0 %v1132
    %v1134 = vpop.xlane.xlu0 %1133
    %v1135 = vsel %vm537, %v480, 0.0
    %1136 = vadd.xlane.f32.xlu0 %v1135
    %v1137 = vpop.xlane.xlu0 %1136
    %v1138 = vsel %vm537, %v481, 0.0
    %1139 = vadd.xlane.f32.xlu0 %v1138
    %v1140 = vpop.xlane.xlu0 %1139
    %v1141 = vsel %vm537, %v482, 0.0
    %1142 = vadd.xlane.f32.xlu0 %v1141
    %v1143 = vpop.xlane.xlu0 %1142
    %v1144 = vsel %vm537, %v483, 0.0
    %1145 = vadd.xlane.f32.xlu0 %v1144
    %v1146 = vpop.xlane.xlu0 %1145
    %v1147 = vsel %vm537, %v484, 0.0
    %1148 = vadd.xlane.f32.xlu0 %v1147
    %v1149 = vpop.xlane.xlu0 %1148
    %v1150 = vsel %vm537, %v485, 0.0
    %1151 = vadd.xlane.f32.xlu0 %v1150
    %v1152 = vpop.xlane.xlu0 %1151
    %v1153 = vsel %vm537, %v486, 0.0
    %1154 = vadd.xlane.f32.xlu0 %v1153
    %v1155 = vpop.xlane.xlu0 %1154
    %v1156 = vsel %vm537, %v487, 0.0
    %1157 = vadd.xlane.f32.xlu0 %v1156
    %v1158 = vpop.xlane.xlu0 %1157
    %v1159 = vsel %vm537, %v488, 0.0
    %1160 = vadd.xlane.f32.xlu0 %v1159
    %v1161 = vpop.xlane.xlu0 %1160
    %v1162 = vsel %vm537, %v489, 0.0
    %1163 = vadd.xlane.f32.xlu0 %v1162
    %v1164 = vpop.xlane.xlu0 %1163
    %v1165 = vsel %vm537, %v490, 0.0
    %1166 = vadd.xlane.f32.xlu0 %v1165
    %v1167 = vpop.xlane.xlu0 %1166
    %v1168 = vsel %vm537, %v491, 0.0
    %1169 = vadd.xlane.f32.xlu0 %v1168
    %v1170 = vpop.xlane.xlu0 %1169
    %v1171 = vsel %vm537, %v492, 0.0
    %1172 = vadd.xlane.f32.xlu0 %v1171
    %v1173 = vpop.xlane.xlu0 %1172
    %v1174 = vsel %vm537, %v493, 0.0
    %1175 = vadd.xlane.f32.xlu0 %v1174
    %v1176 = vpop.xlane.xlu0 %1175
    %v1177 = vsel %vm537, %v494, 0.0
    %1178 = vadd.xlane.f32.xlu0 %v1177
    %v1179 = vpop.xlane.xlu0 %1178
    %v1180 = vsel %vm537, %v495, 0.0
    %1181 = vadd.xlane.f32.xlu0 %v1180
    %v1182 = vpop.xlane.xlu0 %1181
    %v1183 = vsel %vm537, %v496, 0.0
    %1184 = vadd.xlane.f32.xlu0 %v1183
    %v1185 = vpop.xlane.xlu0 %1184
    %v1186 = vsel %vm537, %v497, 0.0
    %1187 = vadd.xlane.f32.xlu0 %v1186
    %v1188 = vpop.xlane.xlu0 %1187
    %v1189 = vsel %vm537, %v498, 0.0
    %1190 = vadd.xlane.f32.xlu0 %v1189
    %v1191 = vpop.xlane.xlu0 %1190
    %v1192 = vsel %vm537, %v499, 0.0
    %1193 = vadd.xlane.f32.xlu0 %v1192
    %v1194 = vpop.xlane.xlu0 %1193
    %v1195 = vsel %vm537, %v500, 0.0
    %1196 = vadd.xlane.f32.xlu0 %v1195
    %v1197 = vpop.xlane.xlu0 %1196
    %v1198 = vsel %vm537, %v501, 0.0
    %1199 = vadd.xlane.f32.xlu0 %v1198
    %v1200 = vpop.xlane.xlu0 %1199
    %v1201 = vsel %vm537, %v502, 0.0
    %1202 = vadd.xlane.f32.xlu0 %v1201
    %v1203 = vpop.xlane.xlu0 %1202
    %v1204 = vsel %vm537, %v503, 0.0
    %1205 = vadd.xlane.f32.xlu0 %v1204
    %v1206 = vpop.xlane.xlu0 %1205
    %v1207 = vsel %vm537, %v504, 0.0
    %1208 = vadd.xlane.f32.xlu0 %v1207
    %v1209 = vpop.xlane.xlu0 %1208
    %v1210 = vsel %vm537, %v505, 0.0
    %1211 = vadd.xlane.f32.xlu0 %v1210
    %v1212 = vpop.xlane.xlu0 %1211
    %v1213 = vsel %vm537, %v506, 0.0
    %1214 = vadd.xlane.f32.xlu0 %v1213
    %v1215 = vpop.xlane.xlu0 %1214
    %v1216 = vsel %vm537, %v507, 0.0
    %1217 = vadd.xlane.f32.xlu0 %v1216
    %v1218 = vpop.xlane.xlu0 %1217
    %v1219 = vsel %vm537, %v508, 0.0
    %1220 = vadd.xlane.f32.xlu0 %v1219
    %v1221 = vpop.xlane.xlu0 %1220
    %v1222 = vsel %vm537, %v509, 0.0
    %1223 = vadd.xlane.f32.xlu0 %v1222
    %v1224 = vpop.xlane.xlu0 %1223
    %v1225 = vsel %vm537, %v510, 0.0
    %1226 = vadd.xlane.f32.xlu0 %v1225
    %v1227 = vpop.xlane.xlu0 %1226
    %v1228 = vsel %vm537, %v511, 0.0
    %1229 = vadd.xlane.f32.xlu0 %v1228
    %v1230 = vpop.xlane.xlu0 %1229
    %v1231 = vsel %vm537, %v512, 0.0
    %1232 = vadd.xlane.f32.xlu0 %v1231
    %v1233 = vpop.xlane.xlu0 %1232
    %v1234 = vsel %vm537, %v513, 0.0
    %1235 = vadd.xlane.f32.xlu0 %v1234
    %v1236 = vpop.xlane.xlu0 %1235
    %v1237 = vsel %vm537, %v514, 0.0
    %1238 = vadd.xlane.f32.xlu0 %v1237
    %v1239 = vpop.xlane.xlu0 %1238
    %v1240 = vsel %vm537, %v515, 0.0
    %1241 = vadd.xlane.f32.xlu0 %v1240
    %v1242 = vpop.xlane.xlu0 %1241
    %v1243 = vsel %vm537, %v516, 0.0
    %1244 = vadd.xlane.f32.xlu0 %v1243
    %v1245 = vpop.xlane.xlu0 %1244
    %v1246 = vsel %vm537, %v517, 0.0
    %1247 = vadd.xlane.f32.xlu0 %v1246
    %v1248 = vpop.xlane.xlu0 %1247
    %v1249 = vsel %vm537, %v518, 0.0
    %1250 = vadd.xlane.f32.xlu0 %v1249
    %v1251 = vpop.xlane.xlu0 %1250
    %v1252 = vsel %vm537, %v519, 0.0
    %1253 = vadd.xlane.f32.xlu0 %v1252
    %v1254 = vpop.xlane.xlu0 %1253
    %v1255 = vsel %vm537, %v520, 0.0
    %1256 = vadd.xlane.f32.xlu0 %v1255
    %v1257 = vpop.xlane.xlu0 %1256
    %v1258 = vsel %vm537, %v521, 0.0
    %1259 = vadd.xlane.f32.xlu0 %v1258
    %v1260 = vpop.xlane.xlu0 %1259
    %v1261 = vsel %vm537, %v522, 0.0
    %1262 = vadd.xlane.f32.xlu0 %v1261
    %v1263 = vpop.xlane.xlu0 %1262
    %v1264 = vsel %vm537, %v523, 0.0
    %1265 = vadd.xlane.f32.xlu0 %v1264
    %v1266 = vpop.xlane.xlu0 %1265
    %v1267 = vsel %vm537, %v524, 0.0
    %1268 = vadd.xlane.f32.xlu0 %v1267
    %v1269 = vpop.xlane.xlu0 %1268
    %v1270 = vsel %vm537, %v525, 0.0
    %1271 = vadd.xlane.f32.xlu0 %v1270
    %v1272 = vpop.xlane.xlu0 %1271
    %v1273 = vsel %vm537, %v526, 0.0
    %1274 = vadd.xlane.f32.xlu0 %v1273
    %v1275 = vpop.xlane.xlu0 %1274
    %v1276 = vsel %vm537, %v527, 0.0
    %1277 = vadd.xlane.f32.xlu0 %v1276
    %v1278 = vpop.xlane.xlu0 %1277
    %v1279 = vsel %vm537, %v528, 0.0
    %1280 = vadd.xlane.f32.xlu0 %v1279
    %v1281 = vpop.xlane.xlu0 %1280
    %v1282 = vsel %vm537, %v529, 0.0
    %1283 = vadd.xlane.f32.xlu0 %v1282
    %v1284 = vpop.xlane.xlu0 %1283
    %v1285 = vsel %vm537, %v530, 0.0
    %1286 = vadd.xlane.f32.xlu0 %v1285
    %v1287 = vpop.xlane.xlu0 %1286
    %v1288 = vsel %vm537, %v531, 0.0
    %1289 = vadd.xlane.f32.xlu0 %v1288
    %v1290 = vpop.xlane.xlu0 %1289
    %v1291 = vsel %vm537, %v532, 0.0
    %1292 = vadd.xlane.f32.xlu0 %v1291
    %v1293 = vpop.xlane.xlu0 %1292
    %v1294 = vsel %vm537, %v533, 0.0
    %1295 = vadd.xlane.f32.xlu0 %v1294
    %v1296 = vpop.xlane.xlu0 %1295
    %v1297 = vsel %vm537, %v534, 0.0
    %1298 = vadd.xlane.f32.xlu0 %v1297
    %v1299 = vpop.xlane.xlu0 %1298
    %v1300 = vsel %vm537, %v535, 0.0
    %1301 = vadd.xlane.f32.xlu0 %v1300
    %v1302 = vpop.xlane.xlu0 %1301
    %v1303 = vsel %vm537, %v536, 0.0
    %1304 = vadd.xlane.f32.xlu0 %v1303
    %v1305 = vpop.xlane.xlu0 %1304
    %v1306 = vld [vmem:[%s2] sm:$0xff]
    %v1307 = vld [vmem:[%s2 + $0x8] sm:$0xff]
    %v1308 = vld [vmem:[%s2 + $0x10] sm:$0xff]
    %v1309 = vld [vmem:[%s2 + $0x18] sm:$0xff]
    %v1310 = vld [vmem:[%s2 + $0x20] sm:$0xff]
    %v1311 = vld [vmem:[%s2 + $0x28] sm:$0xff]
    %v1312 = vld [vmem:[%s2 + $0x30] sm:$0xff]
    %v1313 = vld [vmem:[%s2 + $0x38] sm:$0xff]
    %v1314 = vld [vmem:[%s2 + $0x40] sm:$0xf]
    %v1315 = vld [vmem:[%s2 + $0x48] sm:$0xf]
    %v1316 = vld [vmem:[%s2 + $0x50] sm:$0xf]
    %v1317 = vld [vmem:[%s2 + $0x58] sm:$0xf]
    %v1318 = vld [vmem:[%s2 + $0x60] sm:$0xf]
    %v1319 = vld [vmem:[%s2 + $0x68] sm:$0xf]
    %v1320 = vld [vmem:[%s2 + $0x70] sm:$0xf]
    %v1321 = vld [vmem:[%s2 + $0x78] sm:$0xf]
    %v1322 = vld [vmem:[%s3] sm:$0x1]
    %v1324 = vlaneseq
    %v1325 = vshrl.u32 %v1324, 7
    %v1326 = vsub.s32 0, %v1325
    %v1327 = vrot.slane %v1322, %v1326
    %v1585 = vlaneseq
    %v1586 = vand.u32 %v1585, 127
    %v1587 = vlaneseq
    %v1588 = vshrl.u32 %v1587, 7
    %v1589 = vsub.s32 %v1586, %v1588
    %v1590 = vrot.slane %v540, %v1589
    %v1591 = vadd.s32 %v1586, 4294967288
    %v1592 = vlaneseq
    %v1593 = vshrl.u32 %v1592, 7
    %v1594 = vsub.s32 %v1591, %v1593
    %v1595 = vrot.slane %v543, %v1594
    %vm1596 = vcmask 130112
    %v1597 = vsel %vm1596, %v1595, %v1590
    %v1598 = vadd.s32 %v1586, 4294967280
    %v1599 = vlaneseq
    %v1600 = vshrl.u32 %v1599, 7
    %v1601 = vsub.s32 %v1598, %v1600
    %v1602 = vrot.slane %v546, %v1601
    %vm1603 = vcmask 195712
    %v1604 = vsel %vm1603, %v1602, %v1597
    %v1605 = vadd.s32 %v1586, 4294967272
    %v1606 = vlaneseq
    %v1607 = vshrl.u32 %v1606, 7
    %v1608 = vsub.s32 %v1605, %v1607
    %v1609 = vrot.slane %v549, %v1608
    %vm1610 = vcmask 261312
    %v1611 = vsel %vm1610, %v1609, %v1604
    %v1612 = vadd.s32 %v1586, 4294967264
    %v1613 = vlaneseq
    %v1614 = vshrl.u32 %v1613, 7
    %v1615 = vsub.s32 %v1612, %v1614
    %v1616 = vrot.slane %v552, %v1615
    %vm1617 = vcmask 326912
    %v1618 = vsel %vm1617, %v1616, %v1611
    %v1619 = vadd.s32 %v1586, 4294967256
    %v1620 = vlaneseq
    %v1621 = vshrl.u32 %v1620, 7
    %v1622 = vsub.s32 %v1619, %v1621
    %v1623 = vrot.slane %v555, %v1622
    %vm1624 = vcmask 392512
    %v1625 = vsel %vm1624, %v1623, %v1618
    %v1626 = vadd.s32 %v1586, 4294967248
    %v1627 = vlaneseq
    %v1628 = vshrl.u32 %v1627, 7
    %v1629 = vsub.s32 %v1626, %v1628
    %v1630 = vrot.slane %v558, %v1629
    %vm1631 = vcmask 458112
    %v1632 = vsel %vm1631, %v1630, %v1625
    %v1633 = vadd.s32 %v1586, 4294967240
    %v1634 = vlaneseq
    %v1635 = vshrl.u32 %v1634, 7
    %v1636 = vsub.s32 %v1633, %v1635
    %v1637 = vrot.slane %v561, %v1636
    %vm1638 = vcmask 523712
    %v1639 = vsel %vm1638, %v1637, %v1632
    %v1640 = vadd.s32 %v1586, 4294967232
    %v1641 = vlaneseq
    %v1642 = vshrl.u32 %v1641, 7
    %v1643 = vsub.s32 %v1640, %v1642
    %v1644 = vrot.slane %v564, %v1643
    %vm1645 = vcmask 589312
    %v1646 = vsel %vm1645, %v1644, %v1639
    %v1647 = vadd.s32 %v1586, 4294967224
    %v1648 = vlaneseq
    %v1649 = vshrl.u32 %v1648, 7
    %v1650 = vsub.s32 %v1647, %v1649
    %v1651 = vrot.slane %v567, %v1650
    %vm1652 = vcmask 654912
    %v1653 = vsel %vm1652, %v1651, %v1646
    %v1654 = vadd.s32 %v1586, 4294967216
    %v1655 = vlaneseq
    %v1656 = vshrl.u32 %v1655, 7
    %v1657 = vsub.s32 %v1654, %v1656
    %v1658 = vrot.slane %v570, %v1657
    %vm1659 = vcmask 720512
    %v1660 = vsel %vm1659, %v1658, %v1653
    %v1661 = vadd.s32 %v1586, 4294967208
    %v1662 = vlaneseq
    %v1663 = vshrl.u32 %v1662, 7
    %v1664 = vsub.s32 %v1661, %v1663
    %v1665 = vrot.slane %v573, %v1664
    %vm1666 = vcmask 786112
    %v1667 = vsel %vm1666, %v1665, %v1660
    %v1668 = vadd.s32 %v1586, 4294967200
    %v1669 = vlaneseq
    %v1670 = vshrl.u32 %v1669, 7
    %v1671 = vsub.s32 %v1668, %v1670
    %v1672 = vrot.slane %v576, %v1671
    %vm1673 = vcmask 851712
    %v1674 = vsel %vm1673, %v1672, %v1667
    %v1675 = vadd.s32 %v1586, 4294967192
    %v1676 = vlaneseq
    %v1677 = vshrl.u32 %v1676, 7
    %v1678 = vsub.s32 %v1675, %v1677
    %v1679 = vrot.slane %v579, %v1678
    %vm1680 = vcmask 917312
    %v1681 = vsel %vm1680, %v1679, %v1674
    %v1682 = vadd.s32 %v1586, 4294967184
    %v1683 = vlaneseq
    %v1684 = vshrl.u32 %v1683, 7
    %v1685 = vsub.s32 %v1682, %v1684
    %v1686 = vrot.slane %v582, %v1685
    %vm1687 = vcmask 982912
    %v1688 = vsel %vm1687, %v1686, %v1681
    %v1689 = vadd.s32 %v1586, 4294967176
    %v1690 = vlaneseq
    %v1691 = vshrl.u32 %v1690, 7
    %v1692 = vsub.s32 %v1689, %v1691
    %v1693 = vrot.slane %v585, %v1692
    %vm1694 = vcmask 1048512
    %v1695 = vsel %vm1694, %v1693, %v1688
    %v1696 = vlaneseq
    %v1697 = vshrl.u32 %v1696, 7
    %v1698 = vsub.s32 %v1586, %v1697
    %v1699 = vrot.slane %v588, %v1698
    %v1700 = vlaneseq
    %v1701 = vshrl.u32 %v1700, 7
    %v1702 = vsub.s32 %v1591, %v1701
    %v1703 = vrot.slane %v591, %v1702
    %v1704 = vsel %vm1596, %v1703, %v1699
    %v1705 = vlaneseq
    %v1706 = vshrl.u32 %v1705, 7
    %v1707 = vsub.s32 %v1598, %v1706
    %v1708 = vrot.slane %v594, %v1707
    %v1709 = vsel %vm1603, %v1708, %v1704
    %v1710 = vlaneseq
    %v1711 = vshrl.u32 %v1710, 7
    %v1712 = vsub.s32 %v1605, %v1711
    %v1713 = vrot.slane %v597, %v1712
    %v1714 = vsel %vm1610, %v1713, %v1709
    %v1715 = vlaneseq
    %v1716 = vshrl.u32 %v1715, 7
    %v1717 = vsub.s32 %v1612, %v1716
    %v1718 = vrot.slane %v600, %v1717
    %v1719 = vsel %vm1617, %v1718, %v1714
    %v1720 = vlaneseq
    %v1721 = vshrl.u32 %v1720, 7
    %v1722 = vsub.s32 %v1619, %v1721
    %v1723 = vrot.slane %v603, %v1722
    %v1724 = vsel %vm1624, %v1723, %v1719
    %v1725 = vlaneseq
    %v1726 = vshrl.u32 %v1725, 7
    %v1727 = vsub.s32 %v1626, %v1726
    %v1728 = vrot.slane %v606, %v1727
    %v1729 = vsel %vm1631, %v1728, %v1724
    %v1730 = vlaneseq
    %v1731 = vshrl.u32 %v1730, 7
    %v1732 = vsub.s32 %v1633, %v1731
    %v1733 = vrot.slane %v609, %v1732
    %v1734 = vsel %vm1638, %v1733, %v1729
    %v1735 = vlaneseq
    %v1736 = vshrl.u32 %v1735, 7
    %v1737 = vsub.s32 %v1640, %v1736
    %v1738 = vrot.slane %v612, %v1737
    %v1739 = vsel %vm1645, %v1738, %v1734
    %v1740 = vlaneseq
    %v1741 = vshrl.u32 %v1740, 7
    %v1742 = vsub.s32 %v1647, %v1741
    %v1743 = vrot.slane %v615, %v1742
    %v1744 = vsel %vm1652, %v1743, %v1739
    %v1745 = vlaneseq
    %v1746 = vshrl.u32 %v1745, 7
    %v1747 = vsub.s32 %v1654, %v1746
    %v1748 = vrot.slane %v618, %v1747
    %v1749 = vsel %vm1659, %v1748, %v1744
    %v1750 = vlaneseq
    %v1751 = vshrl.u32 %v1750, 7
    %v1752 = vsub.s32 %v1661, %v1751
    %v1753 = vrot.slane %v621, %v1752
    %v1754 = vsel %vm1666, %v1753, %v1749
    %v1755 = vlaneseq
    %v1756 = vshrl.u32 %v1755, 7
    %v1757 = vsub.s32 %v1668, %v1756
    %v1758 = vrot.slane %v624, %v1757
    %v1759 = vsel %vm1673, %v1758, %v1754
    %v1760 = vlaneseq
    %v1761 = vshrl.u32 %v1760, 7
    %v1762 = vsub.s32 %v1675, %v1761
    %v1763 = vrot.slane %v627, %v1762
    %v1764 = vsel %vm1680, %v1763, %v1759
    %v1765 = vlaneseq
    %v1766 = vshrl.u32 %v1765, 7
    %v1767 = vsub.s32 %v1682, %v1766
    %v1768 = vrot.slane %v630, %v1767
    %v1769 = vsel %vm1687, %v1768, %v1764
    %v1770 = vlaneseq
    %v1771 = vshrl.u32 %v1770, 7
    %v1772 = vsub.s32 %v1689, %v1771
    %v1773 = vrot.slane %v633, %v1772
    %v1774 = vsel %vm1694, %v1773, %v1769
    %v1775 = vlaneseq
    %v1776 = vshrl.u32 %v1775, 7
    %v1777 = vsub.s32 %v1586, %v1776
    %v1778 = vrot.slane %v636, %v1777
    %v1779 = vlaneseq
    %v1780 = vshrl.u32 %v1779, 7
    %v1781 = vsub.s32 %v1591, %v1780
    %v1782 = vrot.slane %v639, %v1781
    %v1783 = vsel %vm1596, %v1782, %v1778
    %v1784 = vlaneseq
    %v1785 = vshrl.u32 %v1784, 7
    %v1786 = vsub.s32 %v1598, %v1785
    %v1787 = vrot.slane %v642, %v1786
    %v1788 = vsel %vm1603, %v1787, %v1783
    %v1789 = vlaneseq
    %v1790 = vshrl.u32 %v1789, 7
    %v1791 = vsub.s32 %v1605, %v1790
    %v1792 = vrot.slane %v645, %v1791
    %v1793 = vsel %vm1610, %v1792, %v1788
    %v1794 = vlaneseq
    %v1795 = vshrl.u32 %v1794, 7
    %v1796 = vsub.s32 %v1612, %v1795
    %v1797 = vrot.slane %v648, %v1796
    %v1798 = vsel %vm1617, %v1797, %v1793
    %v1799 = vlaneseq
    %v1800 = vshrl.u32 %v1799, 7
    %v1801 = vsub.s32 %v1619, %v1800
    %v1802 = vrot.slane %v651, %v1801
    %v1803 = vsel %vm1624, %v1802, %v1798
    %v1804 = vlaneseq
    %v1805 = vshrl.u32 %v1804, 7
    %v1806 = vsub.s32 %v1626, %v1805
    %v1807 = vrot.slane %v654, %v1806
    %v1808 = vsel %vm1631, %v1807, %v1803
    %v1809 = vlaneseq
    %v1810 = vshrl.u32 %v1809, 7
    %v1811 = vsub.s32 %v1633, %v1810
    %v1812 = vrot.slane %v657, %v1811
    %v1813 = vsel %vm1638, %v1812, %v1808
    %v1814 = vlaneseq
    %v1815 = vshrl.u32 %v1814, 7
    %v1816 = vsub.s32 %v1640, %v1815
    %v1817 = vrot.slane %v660, %v1816
    %v1818 = vsel %vm1645, %v1817, %v1813
    %v1819 = vlaneseq
    %v1820 = vshrl.u32 %v1819, 7
    %v1821 = vsub.s32 %v1647, %v1820
    %v1822 = vrot.slane %v663, %v1821
    %v1823 = vsel %vm1652, %v1822, %v1818
    %v1824 = vlaneseq
    %v1825 = vshrl.u32 %v1824, 7
    %v1826 = vsub.s32 %v1654, %v1825
    %v1827 = vrot.slane %v666, %v1826
    %v1828 = vsel %vm1659, %v1827, %v1823
    %v1829 = vlaneseq
    %v1830 = vshrl.u32 %v1829, 7
    %v1831 = vsub.s32 %v1661, %v1830
    %v1832 = vrot.slane %v669, %v1831
    %v1833 = vsel %vm1666, %v1832, %v1828
    %v1834 = vlaneseq
    %v1835 = vshrl.u32 %v1834, 7
    %v1836 = vsub.s32 %v1668, %v1835
    %v1837 = vrot.slane %v672, %v1836
    %v1838 = vsel %vm1673, %v1837, %v1833
    %v1839 = vlaneseq
    %v1840 = vshrl.u32 %v1839, 7
    %v1841 = vsub.s32 %v1675, %v1840
    %v1842 = vrot.slane %v675, %v1841
    %v1843 = vsel %vm1680, %v1842, %v1838
    %v1844 = vlaneseq
    %v1845 = vshrl.u32 %v1844, 7
    %v1846 = vsub.s32 %v1682, %v1845
    %v1847 = vrot.slane %v678, %v1846
    %v1848 = vsel %vm1687, %v1847, %v1843
    %v1849 = vlaneseq
    %v1850 = vshrl.u32 %v1849, 7
    %v1851 = vsub.s32 %v1689, %v1850
    %v1852 = vrot.slane %v681, %v1851
    %v1853 = vsel %vm1694, %v1852, %v1848
    %v1854 = vlaneseq
    %v1855 = vshrl.u32 %v1854, 7
    %v1856 = vsub.s32 %v1586, %v1855
    %v1857 = vrot.slane %v684, %v1856
    %v1858 = vlaneseq
    %v1859 = vshrl.u32 %v1858, 7
    %v1860 = vsub.s32 %v1591, %v1859
    %v1861 = vrot.slane %v687, %v1860
    %v1862 = vsel %vm1596, %v1861, %v1857
    %v1863 = vlaneseq
    %v1864 = vshrl.u32 %v1863, 7
    %v1865 = vsub.s32 %v1598, %v1864
    %v1866 = vrot.slane %v690, %v1865
    %v1867 = vsel %vm1603, %v1866, %v1862
    %v1868 = vlaneseq
    %v1869 = vshrl.u32 %v1868, 7
    %v1870 = vsub.s32 %v1605, %v1869
    %v1871 = vrot.slane %v693, %v1870
    %v1872 = vsel %vm1610, %v1871, %v1867
    %v1873 = vlaneseq
    %v1874 = vshrl.u32 %v1873, 7
    %v1875 = vsub.s32 %v1612, %v1874
    %v1876 = vrot.slane %v696, %v1875
    %v1877 = vsel %vm1617, %v1876, %v1872
    %v1878 = vlaneseq
    %v1879 = vshrl.u32 %v1878, 7
    %v1880 = vsub.s32 %v1619, %v1879
    %v1881 = vrot.slane %v699, %v1880
    %v1882 = vsel %vm1624, %v1881, %v1877
    %v1883 = vlaneseq
    %v1884 = vshrl.u32 %v1883, 7
    %v1885 = vsub.s32 %v1626, %v1884
    %v1886 = vrot.slane %v702, %v1885
    %v1887 = vsel %vm1631, %v1886, %v1882
    %v1888 = vlaneseq
    %v1889 = vshrl.u32 %v1888, 7
    %v1890 = vsub.s32 %v1633, %v1889
    %v1891 = vrot.slane %v705, %v1890
    %v1892 = vsel %vm1638, %v1891, %v1887
    %v1893 = vlaneseq
    %v1894 = vshrl.u32 %v1893, 7
    %v1895 = vsub.s32 %v1640, %v1894
    %v1896 = vrot.slane %v708, %v1895
    %v1897 = vsel %vm1645, %v1896, %v1892
    %v1898 = vlaneseq
    %v1899 = vshrl.u32 %v1898, 7
    %v1900 = vsub.s32 %v1647, %v1899
    %v1901 = vrot.slane %v711, %v1900
    %v1902 = vsel %vm1652, %v1901, %v1897
    %v1903 = vlaneseq
    %v1904 = vshrl.u32 %v1903, 7
    %v1905 = vsub.s32 %v1654, %v1904
    %v1906 = vrot.slane %v714, %v1905
    %v1907 = vsel %vm1659, %v1906, %v1902
    %v1908 = vlaneseq
    %v1909 = vshrl.u32 %v1908, 7
    %v1910 = vsub.s32 %v1661, %v1909
    %v1911 = vrot.slane %v717, %v1910
    %v1912 = vsel %vm1666, %v1911, %v1907
    %v1913 = vlaneseq
    %v1914 = vshrl.u32 %v1913, 7
    %v1915 = vsub.s32 %v1668, %v1914
    %v1916 = vrot.slane %v720, %v1915
    %v1917 = vsel %vm1673, %v1916, %v1912
    %v1918 = vlaneseq
    %v1919 = vshrl.u32 %v1918, 7
    %v1920 = vsub.s32 %v1675, %v1919
    %v1921 = vrot.slane %v723, %v1920
    %v1922 = vsel %vm1680, %v1921, %v1917
    %v1923 = vlaneseq
    %v1924 = vshrl.u32 %v1923, 7
    %v1925 = vsub.s32 %v1682, %v1924
    %v1926 = vrot.slane %v726, %v1925
    %v1927 = vsel %vm1687, %v1926, %v1922
    %v1928 = vlaneseq
    %v1929 = vshrl.u32 %v1928, 7
    %v1930 = vsub.s32 %v1689, %v1929
    %v1931 = vrot.slane %v729, %v1930
    %v1932 = vsel %vm1694, %v1931, %v1927
    %v1933 = vlaneseq
    %v1934 = vshrl.u32 %v1933, 7
    %v1935 = vsub.s32 %v1586, %v1934
    %v1936 = vrot.slane %v732, %v1935
    %v1937 = vlaneseq
    %v1938 = vshrl.u32 %v1937, 7
    %v1939 = vsub.s32 %v1591, %v1938
    %v1940 = vrot.slane %v735, %v1939
    %v1941 = vsel %vm1596, %v1940, %v1936
    %v1942 = vlaneseq
    %v1943 = vshrl.u32 %v1942, 7
    %v1944 = vsub.s32 %v1598, %v1943
    %v1945 = vrot.slane %v738, %v1944
    %v1946 = vsel %vm1603, %v1945, %v1941
    %v1947 = vlaneseq
    %v1948 = vshrl.u32 %v1947, 7
    %v1949 = vsub.s32 %v1605, %v1948
    %v1950 = vrot.slane %v741, %v1949
    %v1951 = vsel %vm1610, %v1950, %v1946
    %v1952 = vlaneseq
    %v1953 = vshrl.u32 %v1952, 7
    %v1954 = vsub.s32 %v1612, %v1953
    %v1955 = vrot.slane %v744, %v1954
    %v1956 = vsel %vm1617, %v1955, %v1951
    %v1957 = vlaneseq
    %v1958 = vshrl.u32 %v1957, 7
    %v1959 = vsub.s32 %v1619, %v1958
    %v1960 = vrot.slane %v747, %v1959
    %v1961 = vsel %vm1624, %v1960, %v1956
    %v1962 = vlaneseq
    %v1963 = vshrl.u32 %v1962, 7
    %v1964 = vsub.s32 %v1626, %v1963
    %v1965 = vrot.slane %v750, %v1964
    %v1966 = vsel %vm1631, %v1965, %v1961
    %v1967 = vlaneseq
    %v1968 = vshrl.u32 %v1967, 7
    %v1969 = vsub.s32 %v1633, %v1968
    %v1970 = vrot.slane %v753, %v1969
    %v1971 = vsel %vm1638, %v1970, %v1966
    %v1972 = vlaneseq
    %v1973 = vshrl.u32 %v1972, 7
    %v1974 = vsub.s32 %v1640, %v1973
    %v1975 = vrot.slane %v756, %v1974
    %v1976 = vsel %vm1645, %v1975, %v1971
    %v1977 = vlaneseq
    %v1978 = vshrl.u32 %v1977, 7
    %v1979 = vsub.s32 %v1647, %v1978
    %v1980 = vrot.slane %v759, %v1979
    %v1981 = vsel %vm1652, %v1980, %v1976
    %v1982 = vlaneseq
    %v1983 = vshrl.u32 %v1982, 7
    %v1984 = vsub.s32 %v1654, %v1983
    %v1985 = vrot.slane %v762, %v1984
    %v1986 = vsel %vm1659, %v1985, %v1981
    %v1987 = vlaneseq
    %v1988 = vshrl.u32 %v1987, 7
    %v1989 = vsub.s32 %v1661, %v1988
    %v1990 = vrot.slane %v765, %v1989
    %v1991 = vsel %vm1666, %v1990, %v1986
    %v1992 = vlaneseq
    %v1993 = vshrl.u32 %v1992, 7
    %v1994 = vsub.s32 %v1668, %v1993
    %v1995 = vrot.slane %v768, %v1994
    %v1996 = vsel %vm1673, %v1995, %v1991
    %v1997 = vlaneseq
    %v1998 = vshrl.u32 %v1997, 7
    %v1999 = vsub.s32 %v1675, %v1998
    %v2000 = vrot.slane %v771, %v1999
    %v2001 = vsel %vm1680, %v2000, %v1996
    %v2002 = vlaneseq
    %v2003 = vshrl.u32 %v2002, 7
    %v2004 = vsub.s32 %v1682, %v2003
    %v2005 = vrot.slane %v774, %v2004
    %v2006 = vsel %vm1687, %v2005, %v2001
    %v2007 = vlaneseq
    %v2008 = vshrl.u32 %v2007, 7
    %v2009 = vsub.s32 %v1689, %v2008
    %v2010 = vrot.slane %v777, %v2009
    %v2011 = vsel %vm1694, %v2010, %v2006
    %v2012 = vlaneseq
    %v2013 = vshrl.u32 %v2012, 7
    %v2014 = vsub.s32 %v1586, %v2013
    %v2015 = vrot.slane %v780, %v2014
    %v2016 = vlaneseq
    %v2017 = vshrl.u32 %v2016, 7
    %v2018 = vsub.s32 %v1591, %v2017
    %v2019 = vrot.slane %v783, %v2018
    %v2020 = vsel %vm1596, %v2019, %v2015
    %v2021 = vlaneseq
    %v2022 = vshrl.u32 %v2021, 7
    %v2023 = vsub.s32 %v1598, %v2022
    %v2024 = vrot.slane %v786, %v2023
    %v2025 = vsel %vm1603, %v2024, %v2020
    %v2026 = vlaneseq
    %v2027 = vshrl.u32 %v2026, 7
    %v2028 = vsub.s32 %v1605, %v2027
    %v2029 = vrot.slane %v789, %v2028
    %v2030 = vsel %vm1610, %v2029, %v2025
    %v2031 = vlaneseq
    %v2032 = vshrl.u32 %v2031, 7
    %v2033 = vsub.s32 %v1612, %v2032
    %v2034 = vrot.slane %v792, %v2033
    %v2035 = vsel %vm1617, %v2034, %v2030
    %v2036 = vlaneseq
    %v2037 = vshrl.u32 %v2036, 7
    %v2038 = vsub.s32 %v1619, %v2037
    %v2039 = vrot.slane %v795, %v2038
    %v2040 = vsel %vm1624, %v2039, %v2035
    %v2041 = vlaneseq
    %v2042 = vshrl.u32 %v2041, 7
    %v2043 = vsub.s32 %v1626, %v2042
    %v2044 = vrot.slane %v798, %v2043
    %v2045 = vsel %vm1631, %v2044, %v2040
    %v2046 = vlaneseq
    %v2047 = vshrl.u32 %v2046, 7
    %v2048 = vsub.s32 %v1633, %v2047
    %v2049 = vrot.slane %v801, %v2048
    %v2050 = vsel %vm1638, %v2049, %v2045
    %v2051 = vlaneseq
    %v2052 = vshrl.u32 %v2051, 7
    %v2053 = vsub.s32 %v1640, %v2052
    %v2054 = vrot.slane %v804, %v2053
    %v2055 = vsel %vm1645, %v2054, %v2050
    %v2056 = vlaneseq
    %v2057 = vshrl.u32 %v2056, 7
    %v2058 = vsub.s32 %v1647, %v2057
    %v2059 = vrot.slane %v807, %v2058
    %v2060 = vsel %vm1652, %v2059, %v2055
    %v2061 = vlaneseq
    %v2062 = vshrl.u32 %v2061, 7
    %v2063 = vsub.s32 %v1654, %v2062
    %v2064 = vrot.slane %v810, %v2063
    %v2065 = vsel %vm1659, %v2064, %v2060
    %v2066 = vlaneseq
    %v2067 = vshrl.u32 %v2066, 7
    %v2068 = vsub.s32 %v1661, %v2067
    %v2069 = vrot.slane %v813, %v2068
    %v2070 = vsel %vm1666, %v2069, %v2065
    %v2071 = vlaneseq
    %v2072 = vshrl.u32 %v2071, 7
    %v2073 = vsub.s32 %v1668, %v2072
    %v2074 = vrot.slane %v816, %v2073
    %v2075 = vsel %vm1673, %v2074, %v2070
    %v2076 = vlaneseq
    %v2077 = vshrl.u32 %v2076, 7
    %v2078 = vsub.s32 %v1675, %v2077
    %v2079 = vrot.slane %v819, %v2078
    %v2080 = vsel %vm1680, %v2079, %v2075
    %v2081 = vlaneseq
    %v2082 = vshrl.u32 %v2081, 7
    %v2083 = vsub.s32 %v1682, %v2082
    %v2084 = vrot.slane %v822, %v2083
    %v2085 = vsel %vm1687, %v2084, %v2080
    %v2086 = vlaneseq
    %v2087 = vshrl.u32 %v2086, 7
    %v2088 = vsub.s32 %v1689, %v2087
    %v2089 = vrot.slane %v825, %v2088
    %v2090 = vsel %vm1694, %v2089, %v2085
    %v2091 = vlaneseq
    %v2092 = vshrl.u32 %v2091, 7
    %v2093 = vsub.s32 %v1586, %v2092
    %v2094 = vrot.slane %v828, %v2093
    %v2095 = vlaneseq
    %v2096 = vshrl.u32 %v2095, 7
    %v2097 = vsub.s32 %v1591, %v2096
    %v2098 = vrot.slane %v831, %v2097
    %v2099 = vsel %vm1596, %v2098, %v2094
    %v2100 = vlaneseq
    %v2101 = vshrl.u32 %v2100, 7
    %v2102 = vsub.s32 %v1598, %v2101
    %v2103 = vrot.slane %v834, %v2102
    %v2104 = vsel %vm1603, %v2103, %v2099
    %v2105 = vlaneseq
    %v2106 = vshrl.u32 %v2105, 7
    %v2107 = vsub.s32 %v1605, %v2106
    %v2108 = vrot.slane %v837, %v2107
    %v2109 = vsel %vm1610, %v2108, %v2104
    %v2110 = vlaneseq
    %v2111 = vshrl.u32 %v2110, 7
    %v2112 = vsub.s32 %v1612, %v2111
    %v2113 = vrot.slane %v840, %v2112
    %v2114 = vsel %vm1617, %v2113, %v2109
    %v2115 = vlaneseq
    %v2116 = vshrl.u32 %v2115, 7
    %v2117 = vsub.s32 %v1619, %v2116
    %v2118 = vrot.slane %v843, %v2117
    %v2119 = vsel %vm1624, %v2118, %v2114
    %v2120 = vlaneseq
    %v2121 = vshrl.u32 %v2120, 7
    %v2122 = vsub.s32 %v1626, %v2121
    %v2123 = vrot.slane %v846, %v2122
    %v2124 = vsel %vm1631, %v2123, %v2119
    %v2125 = vlaneseq
    %v2126 = vshrl.u32 %v2125, 7
    %v2127 = vsub.s32 %v1633, %v2126
    %v2128 = vrot.slane %v849, %v2127
    %v2129 = vsel %vm1638, %v2128, %v2124
    %v2130 = vlaneseq
    %v2131 = vshrl.u32 %v2130, 7
    %v2132 = vsub.s32 %v1640, %v2131
    %v2133 = vrot.slane %v852, %v2132
    %v2134 = vsel %vm1645, %v2133, %v2129
    %v2135 = vlaneseq
    %v2136 = vshrl.u32 %v2135, 7
    %v2137 = vsub.s32 %v1647, %v2136
    %v2138 = vrot.slane %v855, %v2137
    %v2139 = vsel %vm1652, %v2138, %v2134
    %v2140 = vlaneseq
    %v2141 = vshrl.u32 %v2140, 7
    %v2142 = vsub.s32 %v1654, %v2141
    %v2143 = vrot.slane %v858, %v2142
    %v2144 = vsel %vm1659, %v2143, %v2139
    %v2145 = vlaneseq
    %v2146 = vshrl.u32 %v2145, 7
    %v2147 = vsub.s32 %v1661, %v2146
    %v2148 = vrot.slane %v861, %v2147
    %v2149 = vsel %vm1666, %v2148, %v2144
    %v2150 = vlaneseq
    %v2151 = vshrl.u32 %v2150, 7
    %v2152 = vsub.s32 %v1668, %v2151
    %v2153 = vrot.slane %v864, %v2152
    %v2154 = vsel %vm1673, %v2153, %v2149
    %v2155 = vlaneseq
    %v2156 = vshrl.u32 %v2155, 7
    %v2157 = vsub.s32 %v1675, %v2156
    %v2158 = vrot.slane %v867, %v2157
    %v2159 = vsel %vm1680, %v2158, %v2154
    %v2160 = vlaneseq
    %v2161 = vshrl.u32 %v2160, 7
    %v2162 = vsub.s32 %v1682, %v2161
    %v2163 = vrot.slane %v870, %v2162
    %v2164 = vsel %vm1687, %v2163, %v2159
    %v2165 = vlaneseq
    %v2166 = vshrl.u32 %v2165, 7
    %v2167 = vsub.s32 %v1689, %v2166
    %v2168 = vrot.slane %v873, %v2167
    %v2169 = vsel %vm1694, %v2168, %v2164
    %v2170 = vlaneseq
    %v2171 = vshrl.u32 %v2170, 7
    %v2172 = vsub.s32 %v1586, %v2171
    %v2173 = vrot.slane %v876, %v2172
    %v2174 = vlaneseq
    %v2175 = vshrl.u32 %v2174, 7
    %v2176 = vsub.s32 %v1591, %v2175
    %v2177 = vrot.slane %v879, %v2176
    %v2178 = vsel %vm1596, %v2177, %v2173
    %v2179 = vlaneseq
    %v2180 = vshrl.u32 %v2179, 7
    %v2181 = vsub.s32 %v1598, %v2180
    %v2182 = vrot.slane %v882, %v2181
    %v2183 = vsel %vm1603, %v2182, %v2178
    %v2184 = vlaneseq
    %v2185 = vshrl.u32 %v2184, 7
    %v2186 = vsub.s32 %v1605, %v2185
    %v2187 = vrot.slane %v885, %v2186
    %v2188 = vsel %vm1610, %v2187, %v2183
    %v2189 = vlaneseq
    %v2190 = vshrl.u32 %v2189, 7
    %v2191 = vsub.s32 %v1612, %v2190
    %v2192 = vrot.slane %v888, %v2191
    %v2193 = vsel %vm1617, %v2192, %v2188
    %v2194 = vlaneseq
    %v2195 = vshrl.u32 %v2194, 7
    %v2196 = vsub.s32 %v1619, %v2195
    %v2197 = vrot.slane %v891, %v2196
    %v2198 = vsel %vm1624, %v2197, %v2193
    %v2199 = vlaneseq
    %v2200 = vshrl.u32 %v2199, 7
    %v2201 = vsub.s32 %v1626, %v2200
    %v2202 = vrot.slane %v894, %v2201
    %v2203 = vsel %vm1631, %v2202, %v2198
    %v2204 = vlaneseq
    %v2205 = vshrl.u32 %v2204, 7
    %v2206 = vsub.s32 %v1633, %v2205
    %v2207 = vrot.slane %v897, %v2206
    %v2208 = vsel %vm1638, %v2207, %v2203
    %v2209 = vlaneseq
    %v2210 = vshrl.u32 %v2209, 7
    %v2211 = vsub.s32 %v1640, %v2210
    %v2212 = vrot.slane %v900, %v2211
    %v2213 = vsel %vm1645, %v2212, %v2208
    %v2214 = vlaneseq
    %v2215 = vshrl.u32 %v2214, 7
    %v2216 = vsub.s32 %v1647, %v2215
    %v2217 = vrot.slane %v903, %v2216
    %v2218 = vsel %vm1652, %v2217, %v2213
    %v2219 = vlaneseq
    %v2220 = vshrl.u32 %v2219, 7
    %v2221 = vsub.s32 %v1654, %v2220
    %v2222 = vrot.slane %v906, %v2221
    %v2223 = vsel %vm1659, %v2222, %v2218
    %v2224 = vlaneseq
    %v2225 = vshrl.u32 %v2224, 7
    %v2226 = vsub.s32 %v1661, %v2225
    %v2227 = vrot.slane %v909, %v2226
    %v2228 = vsel %vm1666, %v2227, %v2223
    %v2229 = vlaneseq
    %v2230 = vshrl.u32 %v2229, 7
    %v2231 = vsub.s32 %v1668, %v2230
    %v2232 = vrot.slane %v912, %v2231
    %v2233 = vsel %vm1673, %v2232, %v2228
    %v2234 = vlaneseq
    %v2235 = vshrl.u32 %v2234, 7
    %v2236 = vsub.s32 %v1675, %v2235
    %v2237 = vrot.slane %v915, %v2236
    %v2238 = vsel %vm1680, %v2237, %v2233
    %v2239 = vlaneseq
    %v2240 = vshrl.u32 %v2239, 7
    %v2241 = vsub.s32 %v1682, %v2240
    %v2242 = vrot.slane %v918, %v2241
    %v2243 = vsel %vm1687, %v2242, %v2238
    %v2244 = vlaneseq
    %v2245 = vshrl.u32 %v2244, 7
    %v2246 = vsub.s32 %v1689, %v2245
    %v2247 = vrot.slane %v921, %v2246
    %v2248 = vsel %vm1694, %v2247, %v2243
    %v2249 = vlaneseq
    %v2250 = vshrl.u32 %v2249, 7
    %v2251 = vsub.s32 %v1586, %v2250
    %v2252 = vrot.slane %v924, %v2251
    %v2253 = vlaneseq
    %v2254 = vshrl.u32 %v2253, 7
    %v2255 = vsub.s32 %v1591, %v2254
    %v2256 = vrot.slane %v927, %v2255
    %v2257 = vsel %vm1596, %v2256, %v2252
    %v2258 = vlaneseq
    %v2259 = vshrl.u32 %v2258, 7
    %v2260 = vsub.s32 %v1598, %v2259
    %v2261 = vrot.slane %v930, %v2260
    %v2262 = vsel %vm1603, %v2261, %v2257
    %v2263 = vlaneseq
    %v2264 = vshrl.u32 %v2263, 7
    %v2265 = vsub.s32 %v1605, %v2264
    %v2266 = vrot.slane %v933, %v2265
    %v2267 = vsel %vm1610, %v2266, %v2262
    %v2268 = vlaneseq
    %v2269 = vshrl.u32 %v2268, 7
    %v2270 = vsub.s32 %v1612, %v2269
    %v2271 = vrot.slane %v936, %v2270
    %v2272 = vsel %vm1617, %v2271, %v2267
    %v2273 = vlaneseq
    %v2274 = vshrl.u32 %v2273, 7
    %v2275 = vsub.s32 %v1619, %v2274
    %v2276 = vrot.slane %v939, %v2275
    %v2277 = vsel %vm1624, %v2276, %v2272
    %v2278 = vlaneseq
    %v2279 = vshrl.u32 %v2278, 7
    %v2280 = vsub.s32 %v1626, %v2279
    %v2281 = vrot.slane %v942, %v2280
    %v2282 = vsel %vm1631, %v2281, %v2277
    %v2283 = vlaneseq
    %v2284 = vshrl.u32 %v2283, 7
    %v2285 = vsub.s32 %v1633, %v2284
    %v2286 = vrot.slane %v945, %v2285
    %v2287 = vsel %vm1638, %v2286, %v2282
    %v2288 = vlaneseq
    %v2289 = vshrl.u32 %v2288, 7
    %v2290 = vsub.s32 %v1640, %v2289
    %v2291 = vrot.slane %v948, %v2290
    %v2292 = vsel %vm1645, %v2291, %v2287
    %v2293 = vlaneseq
    %v2294 = vshrl.u32 %v2293, 7
    %v2295 = vsub.s32 %v1647, %v2294
    %v2296 = vrot.slane %v951, %v2295
    %v2297 = vsel %vm1652, %v2296, %v2292
    %v2298 = vlaneseq
    %v2299 = vshrl.u32 %v2298, 7
    %v2300 = vsub.s32 %v1654, %v2299
    %v2301 = vrot.slane %v954, %v2300
    %v2302 = vsel %vm1659, %v2301, %v2297
    %v2303 = vlaneseq
    %v2304 = vshrl.u32 %v2303, 7
    %v2305 = vsub.s32 %v1661, %v2304
    %v2306 = vrot.slane %v957, %v2305
    %v2307 = vsel %vm1666, %v2306, %v2302
    %v2308 = vlaneseq
    %v2309 = vshrl.u32 %v2308, 7
    %v2310 = vsub.s32 %v1668, %v2309
    %v2311 = vrot.slane %v960, %v2310
    %v2312 = vsel %vm1673, %v2311, %v2307
    %v2313 = vlaneseq
    %v2314 = vshrl.u32 %v2313, 7
    %v2315 = vsub.s32 %v1675, %v2314
    %v2316 = vrot.slane %v963, %v2315
    %v2317 = vsel %vm1680, %v2316, %v2312
    %v2318 = vlaneseq
    %v2319 = vshrl.u32 %v2318, 7
    %v2320 = vsub.s32 %v1682, %v2319
    %v2321 = vrot.slane %v966, %v2320
    %v2322 = vsel %vm1687, %v2321, %v2317
    %v2323 = vlaneseq
    %v2324 = vshrl.u32 %v2323, 7
    %v2325 = vsub.s32 %v1689, %v2324
    %v2326 = vrot.slane %v969, %v2325
    %v2327 = vsel %vm1694, %v2326, %v2322
    %v2328 = vlaneseq
    %v2329 = vshrl.u32 %v2328, 7
    %v2330 = vsub.s32 %v1586, %v2329
    %v2331 = vrot.slane %v972, %v2330
    %v2332 = vlaneseq
    %v2333 = vshrl.u32 %v2332, 7
    %v2334 = vsub.s32 %v1591, %v2333
    %v2335 = vrot.slane %v975, %v2334
    %v2336 = vsel %vm1596, %v2335, %v2331
    %v2337 = vlaneseq
    %v2338 = vshrl.u32 %v2337, 7
    %v2339 = vsub.s32 %v1598, %v2338
    %v2340 = vrot.slane %v978, %v2339
    %v2341 = vsel %vm1603, %v2340, %v2336
    %v2342 = vlaneseq
    %v2343 = vshrl.u32 %v2342, 7
    %v2344 = vsub.s32 %v1605, %v2343
    %v2345 = vrot.slane %v981, %v2344
    %v2346 = vsel %vm1610, %v2345, %v2341
    %v2347 = vlaneseq
    %v2348 = vshrl.u32 %v2347, 7
    %v2349 = vsub.s32 %v1612, %v2348
    %v2350 = vrot.slane %v984, %v2349
    %v2351 = vsel %vm1617, %v2350, %v2346
    %v2352 = vlaneseq
    %v2353 = vshrl.u32 %v2352, 7
    %v2354 = vsub.s32 %v1619, %v2353
    %v2355 = vrot.slane %v987, %v2354
    %v2356 = vsel %vm1624, %v2355, %v2351
    %v2357 = vlaneseq
    %v2358 = vshrl.u32 %v2357, 7
    %v2359 = vsub.s32 %v1626, %v2358
    %v2360 = vrot.slane %v990, %v2359
    %v2361 = vsel %vm1631, %v2360, %v2356
    %v2362 = vlaneseq
    %v2363 = vshrl.u32 %v2362, 7
    %v2364 = vsub.s32 %v1633, %v2363
    %v2365 = vrot.slane %v993, %v2364
    %v2366 = vsel %vm1638, %v2365, %v2361
    %v2367 = vlaneseq
    %v2368 = vshrl.u32 %v2367, 7
    %v2369 = vsub.s32 %v1640, %v2368
    %v2370 = vrot.slane %v996, %v2369
    %v2371 = vsel %vm1645, %v2370, %v2366
    %v2372 = vlaneseq
    %v2373 = vshrl.u32 %v2372, 7
    %v2374 = vsub.s32 %v1647, %v2373
    %v2375 = vrot.slane %v999, %v2374
    %v2376 = vsel %vm1652, %v2375, %v2371
    %v2377 = vlaneseq
    %v2378 = vshrl.u32 %v2377, 7
    %v2379 = vsub.s32 %v1654, %v2378
    %v2380 = vrot.slane %v1002, %v2379
    %v2381 = vsel %vm1659, %v2380, %v2376
    %v2382 = vlaneseq
    %v2383 = vshrl.u32 %v2382, 7
    %v2384 = vsub.s32 %v1661, %v2383
    %v2385 = vrot.slane %v1005, %v2384
    %v2386 = vsel %vm1666, %v2385, %v2381
    %v2387 = vlaneseq
    %v2388 = vshrl.u32 %v2387, 7
    %v2389 = vsub.s32 %v1668, %v2388
    %v2390 = vrot.slane %v1008, %v2389
    %v2391 = vsel %vm1673, %v2390, %v2386
    %v2392 = vlaneseq
    %v2393 = vshrl.u32 %v2392, 7
    %v2394 = vsub.s32 %v1675, %v2393
    %v2395 = vrot.slane %v1011, %v2394
    %v2396 = vsel %vm1680, %v2395, %v2391
    %v2397 = vlaneseq
    %v2398 = vshrl.u32 %v2397, 7
    %v2399 = vsub.s32 %v1682, %v2398
    %v2400 = vrot.slane %v1014, %v2399
    %v2401 = vsel %vm1687, %v2400, %v2396
    %v2402 = vlaneseq
    %v2403 = vshrl.u32 %v2402, 7
    %v2404 = vsub.s32 %v1689, %v2403
    %v2405 = vrot.slane %v1017, %v2404
    %v2406 = vsel %vm1694, %v2405, %v2401
    %v2407 = vlaneseq
    %v2408 = vshrl.u32 %v2407, 7
    %v2409 = vsub.s32 %v1586, %v2408
    %v2410 = vrot.slane %v1020, %v2409
    %v2411 = vlaneseq
    %v2412 = vshrl.u32 %v2411, 7
    %v2413 = vsub.s32 %v1591, %v2412
    %v2414 = vrot.slane %v1023, %v2413
    %v2415 = vsel %vm1596, %v2414, %v2410
    %v2416 = vlaneseq
    %v2417 = vshrl.u32 %v2416, 7
    %v2418 = vsub.s32 %v1598, %v2417
    %v2419 = vrot.slane %v1026, %v2418
    %v2420 = vsel %vm1603, %v2419, %v2415
    %v2421 = vlaneseq
    %v2422 = vshrl.u32 %v2421, 7
    %v2423 = vsub.s32 %v1605, %v2422
    %v2424 = vrot.slane %v1029, %v2423
    %v2425 = vsel %vm1610, %v2424, %v2420
    %v2426 = vlaneseq
    %v2427 = vshrl.u32 %v2426, 7
    %v2428 = vsub.s32 %v1612, %v2427
    %v2429 = vrot.slane %v1032, %v2428
    %v2430 = vsel %vm1617, %v2429, %v2425
    %v2431 = vlaneseq
    %v2432 = vshrl.u32 %v2431, 7
    %v2433 = vsub.s32 %v1619, %v2432
    %v2434 = vrot.slane %v1035, %v2433
    %v2435 = vsel %vm1624, %v2434, %v2430
    %v2436 = vlaneseq
    %v2437 = vshrl.u32 %v2436, 7
    %v2438 = vsub.s32 %v1626, %v2437
    %v2439 = vrot.slane %v1038, %v2438
    %v2440 = vsel %vm1631, %v2439, %v2435
    %v2441 = vlaneseq
    %v2442 = vshrl.u32 %v2441, 7
    %v2443 = vsub.s32 %v1633, %v2442
    %v2444 = vrot.slane %v1041, %v2443
    %v2445 = vsel %vm1638, %v2444, %v2440
    %v2446 = vlaneseq
    %v2447 = vshrl.u32 %v2446, 7
    %v2448 = vsub.s32 %v1640, %v2447
    %v2449 = vrot.slane %v1044, %v2448
    %v2450 = vsel %vm1645, %v2449, %v2445
    %v2451 = vlaneseq
    %v2452 = vshrl.u32 %v2451, 7
    %v2453 = vsub.s32 %v1647, %v2452
    %v2454 = vrot.slane %v1047, %v2453
    %v2455 = vsel %vm1652, %v2454, %v2450
    %v2456 = vlaneseq
    %v2457 = vshrl.u32 %v2456, 7
    %v2458 = vsub.s32 %v1654, %v2457
    %v2459 = vrot.slane %v1050, %v2458
    %v2460 = vsel %vm1659, %v2459, %v2455
    %v2461 = vlaneseq
    %v2462 = vshrl.u32 %v2461, 7
    %v2463 = vsub.s32 %v1661, %v2462
    %v2464 = vrot.slane %v1053, %v2463
    %v2465 = vsel %vm1666, %v2464, %v2460
    %v2466 = vlaneseq
    %v2467 = vshrl.u32 %v2466, 7
    %v2468 = vsub.s32 %v1668, %v2467
    %v2469 = vrot.slane %v1056, %v2468
    %v2470 = vsel %vm1673, %v2469, %v2465
    %v2471 = vlaneseq
    %v2472 = vshrl.u32 %v2471, 7
    %v2473 = vsub.s32 %v1675, %v2472
    %v2474 = vrot.slane %v1059, %v2473
    %v2475 = vsel %vm1680, %v2474, %v2470
    %v2476 = vlaneseq
    %v2477 = vshrl.u32 %v2476, 7
    %v2478 = vsub.s32 %v1682, %v2477
    %v2479 = vrot.slane %v1062, %v2478
    %v2480 = vsel %vm1687, %v2479, %v2475
    %v2481 = vlaneseq
    %v2482 = vshrl.u32 %v2481, 7
    %v2483 = vsub.s32 %v1689, %v2482
    %v2484 = vrot.slane %v1065, %v2483
    %v2485 = vsel %vm1694, %v2484, %v2480
    %v2486 = vlaneseq
    %v2487 = vshrl.u32 %v2486, 7
    %v2488 = vsub.s32 %v1586, %v2487
    %v2489 = vrot.slane %v1068, %v2488
    %v2490 = vlaneseq
    %v2491 = vshrl.u32 %v2490, 7
    %v2492 = vsub.s32 %v1591, %v2491
    %v2493 = vrot.slane %v1071, %v2492
    %v2494 = vsel %vm1596, %v2493, %v2489
    %v2495 = vlaneseq
    %v2496 = vshrl.u32 %v2495, 7
    %v2497 = vsub.s32 %v1598, %v2496
    %v2498 = vrot.slane %v1074, %v2497
    %v2499 = vsel %vm1603, %v2498, %v2494
    %v2500 = vlaneseq
    %v2501 = vshrl.u32 %v2500, 7
    %v2502 = vsub.s32 %v1605, %v2501
    %v2503 = vrot.slane %v1077, %v2502
    %v2504 = vsel %vm1610, %v2503, %v2499
    %v2505 = vlaneseq
    %v2506 = vshrl.u32 %v2505, 7
    %v2507 = vsub.s32 %v1612, %v2506
    %v2508 = vrot.slane %v1080, %v2507
    %v2509 = vsel %vm1617, %v2508, %v2504
    %v2510 = vlaneseq
    %v2511 = vshrl.u32 %v2510, 7
    %v2512 = vsub.s32 %v1619, %v2511
    %v2513 = vrot.slane %v1083, %v2512
    %v2514 = vsel %vm1624, %v2513, %v2509
    %v2515 = vlaneseq
    %v2516 = vshrl.u32 %v2515, 7
    %v2517 = vsub.s32 %v1626, %v2516
    %v2518 = vrot.slane %v1086, %v2517
    %v2519 = vsel %vm1631, %v2518, %v2514
    %v2520 = vlaneseq
    %v2521 = vshrl.u32 %v2520, 7
    %v2522 = vsub.s32 %v1633, %v2521
    %v2523 = vrot.slane %v1089, %v2522
    %v2524 = vsel %vm1638, %v2523, %v2519
    %v2525 = vlaneseq
    %v2526 = vshrl.u32 %v2525, 7
    %v2527 = vsub.s32 %v1640, %v2526
    %v2528 = vrot.slane %v1092, %v2527
    %v2529 = vsel %vm1645, %v2528, %v2524
    %v2530 = vlaneseq
    %v2531 = vshrl.u32 %v2530, 7
    %v2532 = vsub.s32 %v1647, %v2531
    %v2533 = vrot.slane %v1095, %v2532
    %v2534 = vsel %vm1652, %v2533, %v2529
    %v2535 = vlaneseq
    %v2536 = vshrl.u32 %v2535, 7
    %v2537 = vsub.s32 %v1654, %v2536
    %v2538 = vrot.slane %v1098, %v2537
    %v2539 = vsel %vm1659, %v2538, %v2534
    %v2540 = vlaneseq
    %v2541 = vshrl.u32 %v2540, 7
    %v2542 = vsub.s32 %v1661, %v2541
    %v2543 = vrot.slane %v1101, %v2542
    %v2544 = vsel %vm1666, %v2543, %v2539
    %v2545 = vlaneseq
    %v2546 = vshrl.u32 %v2545, 7
    %v2547 = vsub.s32 %v1668, %v2546
    %v2548 = vrot.slane %v1104, %v2547
    %v2549 = vsel %vm1673, %v2548, %v2544
    %v2550 = vlaneseq
    %v2551 = vshrl.u32 %v2550, 7
    %v2552 = vsub.s32 %v1675, %v2551
    %v2553 = vrot.slane %v1107, %v2552
    %v2554 = vsel %vm1680, %v2553, %v2549
    %v2555 = vlaneseq
    %v2556 = vshrl.u32 %v2555, 7
    %v2557 = vsub.s32 %v1682, %v2556
    %v2558 = vrot.slane %v1110, %v2557
    %v2559 = vsel %vm1687, %v2558, %v2554
    %v2560 = vlaneseq
    %v2561 = vshrl.u32 %v2560, 7
    %v2562 = vsub.s32 %v1689, %v2561
    %v2563 = vrot.slane %v1113, %v2562
    %v2564 = vsel %vm1694, %v2563, %v2559
    %v2565 = vlaneseq
    %v2566 = vshrl.u32 %v2565, 7
    %v2567 = vsub.s32 %v1586, %v2566
    %v2568 = vrot.slane %v1116, %v2567
    %v2569 = vlaneseq
    %v2570 = vshrl.u32 %v2569, 7
    %v2571 = vsub.s32 %v1591, %v2570
    %v2572 = vrot.slane %v1119, %v2571
    %v2573 = vsel %vm1596, %v2572, %v2568
    %v2574 = vlaneseq
    %v2575 = vshrl.u32 %v2574, 7
    %v2576 = vsub.s32 %v1598, %v2575
    %v2577 = vrot.slane %v1122, %v2576
    %v2578 = vsel %vm1603, %v2577, %v2573
    %v2579 = vlaneseq
    %v2580 = vshrl.u32 %v2579, 7
    %v2581 = vsub.s32 %v1605, %v2580
    %v2582 = vrot.slane %v1125, %v2581
    %v2583 = vsel %vm1610, %v2582, %v2578
    %v2584 = vlaneseq
    %v2585 = vshrl.u32 %v2584, 7
    %v2586 = vsub.s32 %v1612, %v2585
    %v2587 = vrot.slane %v1128, %v2586
    %v2588 = vsel %vm1617, %v2587, %v2583
    %v2589 = vlaneseq
    %v2590 = vshrl.u32 %v2589, 7
    %v2591 = vsub.s32 %v1619, %v2590
    %v2592 = vrot.slane %v1131, %v2591
    %v2593 = vsel %vm1624, %v2592, %v2588
    %v2594 = vlaneseq
    %v2595 = vshrl.u32 %v2594, 7
    %v2596 = vsub.s32 %v1626, %v2595
    %v2597 = vrot.slane %v1134, %v2596
    %v2598 = vsel %vm1631, %v2597, %v2593
    %v2599 = vlaneseq
    %v2600 = vshrl.u32 %v2599, 7
    %v2601 = vsub.s32 %v1633, %v2600
    %v2602 = vrot.slane %v1137, %v2601
    %v2603 = vsel %vm1638, %v2602, %v2598
    %v2604 = vlaneseq
    %v2605 = vshrl.u32 %v2604, 7
    %v2606 = vsub.s32 %v1640, %v2605
    %v2607 = vrot.slane %v1140, %v2606
    %v2608 = vsel %vm1645, %v2607, %v2603
    %v2609 = vlaneseq
    %v2610 = vshrl.u32 %v2609, 7
    %v2611 = vsub.s32 %v1647, %v2610
    %v2612 = vrot.slane %v1143, %v2611
    %v2613 = vsel %vm1652, %v2612, %v2608
    %v2614 = vlaneseq
    %v2615 = vshrl.u32 %v2614, 7
    %v2616 = vsub.s32 %v1654, %v2615
    %v2617 = vrot.slane %v1146, %v2616
    %v2618 = vsel %vm1659, %v2617, %v2613
    %v2619 = vlaneseq
    %v2620 = vshrl.u32 %v2619, 7
    %v2621 = vsub.s32 %v1661, %v2620
    %v2622 = vrot.slane %v1149, %v2621
    %v2623 = vsel %vm1666, %v2622, %v2618
    %v2624 = vlaneseq
    %v2625 = vshrl.u32 %v2624, 7
    %v2626 = vsub.s32 %v1668, %v2625
    %v2627 = vrot.slane %v1152, %v2626
    %v2628 = vsel %vm1673, %v2627, %v2623
    %v2629 = vlaneseq
    %v2630 = vshrl.u32 %v2629, 7
    %v2631 = vsub.s32 %v1675, %v2630
    %v2632 = vrot.slane %v1155, %v2631
    %v2633 = vsel %vm1680, %v2632, %v2628
    %v2634 = vlaneseq
    %v2635 = vshrl.u32 %v2634, 7
    %v2636 = vsub.s32 %v1682, %v2635
    %v2637 = vrot.slane %v1158, %v2636
    %v2638 = vsel %vm1687, %v2637, %v2633
    %v2639 = vlaneseq
    %v2640 = vshrl.u32 %v2639, 7
    %v2641 = vsub.s32 %v1689, %v2640
    %v2642 = vrot.slane %v1161, %v2641
    %v2643 = vsel %vm1694, %v2642, %v2638
    %v2644 = vlaneseq
    %v2645 = vshrl.u32 %v2644, 7
    %v2646 = vsub.s32 %v1586, %v2645
    %v2647 = vrot.slane %v1164, %v2646
    %v2648 = vlaneseq
    %v2649 = vshrl.u32 %v2648, 7
    %v2650 = vsub.s32 %v1591, %v2649
    %v2651 = vrot.slane %v1167, %v2650
    %v2652 = vsel %vm1596, %v2651, %v2647
    %v2653 = vlaneseq
    %v2654 = vshrl.u32 %v2653, 7
    %v2655 = vsub.s32 %v1598, %v2654
    %v2656 = vrot.slane %v1170, %v2655
    %v2657 = vsel %vm1603, %v2656, %v2652
    %v2658 = vlaneseq
    %v2659 = vshrl.u32 %v2658, 7
    %v2660 = vsub.s32 %v1605, %v2659
    %v2661 = vrot.slane %v1173, %v2660
    %v2662 = vsel %vm1610, %v2661, %v2657
    %v2663 = vlaneseq
    %v2664 = vshrl.u32 %v2663, 7
    %v2665 = vsub.s32 %v1612, %v2664
    %v2666 = vrot.slane %v1176, %v2665
    %v2667 = vsel %vm1617, %v2666, %v2662
    %v2668 = vlaneseq
    %v2669 = vshrl.u32 %v2668, 7
    %v2670 = vsub.s32 %v1619, %v2669
    %v2671 = vrot.slane %v1179, %v2670
    %v2672 = vsel %vm1624, %v2671, %v2667
    %v2673 = vlaneseq
    %v2674 = vshrl.u32 %v2673, 7
    %v2675 = vsub.s32 %v1626, %v2674
    %v2676 = vrot.slane %v1182, %v2675
    %v2677 = vsel %vm1631, %v2676, %v2672
    %v2678 = vlaneseq
    %v2679 = vshrl.u32 %v2678, 7
    %v2680 = vsub.s32 %v1633, %v2679
    %v2681 = vrot.slane %v1185, %v2680
    %v2682 = vsel %vm1638, %v2681, %v2677
    %v2683 = vlaneseq
    %v2684 = vshrl.u32 %v2683, 7
    %v2685 = vsub.s32 %v1640, %v2684
    %v2686 = vrot.slane %v1188, %v2685
    %v2687 = vsel %vm1645, %v2686, %v2682
    %v2688 = vlaneseq
    %v2689 = vshrl.u32 %v2688, 7
    %v2690 = vsub.s32 %v1647, %v2689
    %v2691 = vrot.slane %v1191, %v2690
    %v2692 = vsel %vm1652, %v2691, %v2687
    %v2693 = vlaneseq
    %v2694 = vshrl.u32 %v2693, 7
    %v2695 = vsub.s32 %v1654, %v2694
    %v2696 = vrot.slane %v1194, %v2695
    %v2697 = vsel %vm1659, %v2696, %v2692
    %v2698 = vlaneseq
    %v2699 = vshrl.u32 %v2698, 7
    %v2700 = vsub.s32 %v1661, %v2699
    %v2701 = vrot.slane %v1197, %v2700
    %v2702 = vsel %vm1666, %v2701, %v2697
    %v2703 = vlaneseq
    %v2704 = vshrl.u32 %v2703, 7
    %v2705 = vsub.s32 %v1668, %v2704
    %v2706 = vrot.slane %v1200, %v2705
    %v2707 = vsel %vm1673, %v2706, %v2702
    %v2708 = vlaneseq
    %v2709 = vshrl.u32 %v2708, 7
    %v2710 = vsub.s32 %v1675, %v2709
    %v2711 = vrot.slane %v1203, %v2710
    %v2712 = vsel %vm1680, %v2711, %v2707
    %v2713 = vlaneseq
    %v2714 = vshrl.u32 %v2713, 7
    %v2715 = vsub.s32 %v1682, %v2714
    %v2716 = vrot.slane %v1206, %v2715
    %v2717 = vsel %vm1687, %v2716, %v2712
    %v2718 = vlaneseq
    %v2719 = vshrl.u32 %v2718, 7
    %v2720 = vsub.s32 %v1689, %v2719
    %v2721 = vrot.slane %v1209, %v2720
    %v2722 = vsel %vm1694, %v2721, %v2717
    %v2723 = vlaneseq
    %v2724 = vshrl.u32 %v2723, 7
    %v2725 = vsub.s32 %v1586, %v2724
    %v2726 = vrot.slane %v1212, %v2725
    %v2727 = vlaneseq
    %v2728 = vshrl.u32 %v2727, 7
    %v2729 = vsub.s32 %v1591, %v2728
    %v2730 = vrot.slane %v1215, %v2729
    %v2731 = vsel %vm1596, %v2730, %v2726
    %v2732 = vlaneseq
    %v2733 = vshrl.u32 %v2732, 7
    %v2734 = vsub.s32 %v1598, %v2733
    %v2735 = vrot.slane %v1218, %v2734
    %v2736 = vsel %vm1603, %v2735, %v2731
    %v2737 = vlaneseq
    %v2738 = vshrl.u32 %v2737, 7
    %v2739 = vsub.s32 %v1605, %v2738
    %v2740 = vrot.slane %v1221, %v2739
    %v2741 = vsel %vm1610, %v2740, %v2736
    %v2742 = vlaneseq
    %v2743 = vshrl.u32 %v2742, 7
    %v2744 = vsub.s32 %v1612, %v2743
    %v2745 = vrot.slane %v1224, %v2744
    %v2746 = vsel %vm1617, %v2745, %v2741
    %v2747 = vlaneseq
    %v2748 = vshrl.u32 %v2747, 7
    %v2749 = vsub.s32 %v1619, %v2748
    %v2750 = vrot.slane %v1227, %v2749
    %v2751 = vsel %vm1624, %v2750, %v2746
    %v2752 = vlaneseq
    %v2753 = vshrl.u32 %v2752, 7
    %v2754 = vsub.s32 %v1626, %v2753
    %v2755 = vrot.slane %v1230, %v2754
    %v2756 = vsel %vm1631, %v2755, %v2751
    %v2757 = vlaneseq
    %v2758 = vshrl.u32 %v2757, 7
    %v2759 = vsub.s32 %v1633, %v2758
    %v2760 = vrot.slane %v1233, %v2759
    %v2761 = vsel %vm1638, %v2760, %v2756
    %v2762 = vlaneseq
    %v2763 = vshrl.u32 %v2762, 7
    %v2764 = vsub.s32 %v1640, %v2763
    %v2765 = vrot.slane %v1236, %v2764
    %v2766 = vsel %vm1645, %v2765, %v2761
    %v2767 = vlaneseq
    %v2768 = vshrl.u32 %v2767, 7
    %v2769 = vsub.s32 %v1647, %v2768
    %v2770 = vrot.slane %v1239, %v2769
    %v2771 = vsel %vm1652, %v2770, %v2766
    %v2772 = vlaneseq
    %v2773 = vshrl.u32 %v2772, 7
    %v2774 = vsub.s32 %v1654, %v2773
    %v2775 = vrot.slane %v1242, %v2774
    %v2776 = vsel %vm1659, %v2775, %v2771
    %v2777 = vlaneseq
    %v2778 = vshrl.u32 %v2777, 7
    %v2779 = vsub.s32 %v1661, %v2778
    %v2780 = vrot.slane %v1245, %v2779
    %v2781 = vsel %vm1666, %v2780, %v2776
    %v2782 = vlaneseq
    %v2783 = vshrl.u32 %v2782, 7
    %v2784 = vsub.s32 %v1668, %v2783
    %v2785 = vrot.slane %v1248, %v2784
    %v2786 = vsel %vm1673, %v2785, %v2781
    %v2787 = vlaneseq
    %v2788 = vshrl.u32 %v2787, 7
    %v2789 = vsub.s32 %v1675, %v2788
    %v2790 = vrot.slane %v1251, %v2789
    %v2791 = vsel %vm1680, %v2790, %v2786
    %v2792 = vlaneseq
    %v2793 = vshrl.u32 %v2792, 7
    %v2794 = vsub.s32 %v1682, %v2793
    %v2795 = vrot.slane %v1254, %v2794
    %v2796 = vsel %vm1687, %v2795, %v2791
    %v2797 = vlaneseq
    %v2798 = vshrl.u32 %v2797, 7
    %v2799 = vsub.s32 %v1689, %v2798
    %v2800 = vrot.slane %v1257, %v2799
    %v2801 = vsel %vm1694, %v2800, %v2796
    %v2802 = vlaneseq
    %v2803 = vshrl.u32 %v2802, 7
    %v2804 = vsub.s32 %v1586, %v2803
    %v2805 = vrot.slane %v1260, %v2804
    %v2806 = vlaneseq
    %v2807 = vshrl.u32 %v2806, 7
    %v2808 = vsub.s32 %v1591, %v2807
    %v2809 = vrot.slane %v1263, %v2808
    %v2810 = vsel %vm1596, %v2809, %v2805
    %v2811 = vlaneseq
    %v2812 = vshrl.u32 %v2811, 7
    %v2813 = vsub.s32 %v1598, %v2812
    %v2814 = vrot.slane %v1266, %v2813
    %v2815 = vsel %vm1603, %v2814, %v2810
    %v2816 = vlaneseq
    %v2817 = vshrl.u32 %v2816, 7
    %v2818 = vsub.s32 %v1605, %v2817
    %v2819 = vrot.slane %v1269, %v2818
    %v2820 = vsel %vm1610, %v2819, %v2815
    %v2821 = vlaneseq
    %v2822 = vshrl.u32 %v2821, 7
    %v2823 = vsub.s32 %v1612, %v2822
    %v2824 = vrot.slane %v1272, %v2823
    %v2825 = vsel %vm1617, %v2824, %v2820
    %v2826 = vlaneseq
    %v2827 = vshrl.u32 %v2826, 7
    %v2828 = vsub.s32 %v1619, %v2827
    %v2829 = vrot.slane %v1275, %v2828
    %v2830 = vsel %vm1624, %v2829, %v2825
    %v2831 = vlaneseq
    %v2832 = vshrl.u32 %v2831, 7
    %v2833 = vsub.s32 %v1626, %v2832
    %v2834 = vrot.slane %v1278, %v2833
    %v2835 = vsel %vm1631, %v2834, %v2830
    %v2836 = vlaneseq
    %v2837 = vshrl.u32 %v2836, 7
    %v2838 = vsub.s32 %v1633, %v2837
    %v2839 = vrot.slane %v1281, %v2838
    %v2840 = vsel %vm1638, %v2839, %v2835
    %v2841 = vlaneseq
    %v2842 = vshrl.u32 %v2841, 7
    %v2843 = vsub.s32 %v1640, %v2842
    %v2844 = vrot.slane %v1284, %v2843
    %v2845 = vsel %vm1645, %v2844, %v2840
    %v2846 = vlaneseq
    %v2847 = vshrl.u32 %v2846, 7
    %v2848 = vsub.s32 %v1647, %v2847
    %v2849 = vrot.slane %v1287, %v2848
    %v2850 = vsel %vm1652, %v2849, %v2845
    %v2851 = vlaneseq
    %v2852 = vshrl.u32 %v2851, 7
    %v2853 = vsub.s32 %v1654, %v2852
    %v2854 = vrot.slane %v1290, %v2853
    %v2855 = vsel %vm1659, %v2854, %v2850
    %v2856 = vlaneseq
    %v2857 = vshrl.u32 %v2856, 7
    %v2858 = vsub.s32 %v1661, %v2857
    %v2859 = vrot.slane %v1293, %v2858
    %v2860 = vsel %vm1666, %v2859, %v2855
    %v2861 = vlaneseq
    %v2862 = vshrl.u32 %v2861, 7
    %v2863 = vsub.s32 %v1668, %v2862
    %v2864 = vrot.slane %v1296, %v2863
    %v2865 = vsel %vm1673, %v2864, %v2860
    %v2866 = vlaneseq
    %v2867 = vshrl.u32 %v2866, 7
    %v2868 = vsub.s32 %v1675, %v2867
    %v2869 = vrot.slane %v1299, %v2868
    %v2870 = vsel %vm1680, %v2869, %v2865
    %v2871 = vlaneseq
    %v2872 = vshrl.u32 %v2871, 7
    %v2873 = vsub.s32 %v1682, %v2872
    %v2874 = vrot.slane %v1302, %v2873
    %v2875 = vsel %vm1687, %v2874, %v2870
    %v2876 = vlaneseq
    %v2877 = vshrl.u32 %v2876, 7
    %v2878 = vsub.s32 %v1689, %v2877
    %v2879 = vrot.slane %v1305, %v2878
    %v2880 = vsel %vm1694, %v2879, %v2875
    %vm2881 = vcmask 1041409
    %v2882 = vsel %vm2881, %v2327, %v1695
    %v2883 = vsel %vm2881, %v2406, %v1774
    %v2884 = vsel %vm2881, %v2485, %v1853
    %v2885 = vsel %vm2881, %v2564, %v1932
    %v2886 = vsel %vm2881, %v2643, %v2011
    %v2887 = vsel %vm2881, %v2722, %v2090
    %v2888 = vsel %vm2881, %v2801, %v2169
    %v2889 = vsel %vm2881, %v2880, %v2248
    %2898 = vmatprep.subr.mxu0 %v1307
    %2899 = vmatpush1.xpose.msra.mxu0 %v1306
    %2900 = vmatprep.subr.mxu0 %v1315
    %2901 = vmatpush1.xpose.msra.mxu0 %v1314
    %2902 = vmatprep.subr.mxu0 0.0
    %2903 = vmatpush1.xpose.msra.mxu0 0.0
    %2904 = vmatprep.subr.mxu0 0.0
    %2905 = vmatpush1.xpose.msra.mxu0 0.0
    %2906 = vmatprep.subr.mxu0 0.0
    %2907 = vmatpush1.xpose.msra.mxu0 0.0
    %2908 = vmatprep.subr.mxu0 0.0
    %2909 = vmatpush1.xpose.msra.mxu0 0.0
    %2910 = vmatprep.subr.mxu0 0.0
    %2911 = vmatpush1.xpose.msra.mxu0 0.0
    %2912 = vmatprep.subr.mxu0 0.0
    %2913 = vmatpush1.xpose.msra.mxu0 0.0
    %2914 = vmatprep.subr.mxu0 0.0
    %2915 = vmatpush1.xpose.msra.mxu0 0.0
    %2916 = vmatprep.subr.mxu0 0.0
    %2917 = vmatpush1.xpose.msra.mxu0 0.0
    %2918 = vmatprep.subr.mxu0 0.0
    %2919 = vmatpush1.xpose.msra.mxu0 0.0
    %2920 = vmatprep.subr.mxu0 0.0
    %2921 = vmatpush1.xpose.msra.mxu0 0.0
    %2922 = vmatprep.subr.mxu0 0.0
    %2923 = vmatpush1.xpose.msra.mxu0 0.0
    %2924 = vmatprep.subr.mxu0 0.0
    %2925 = vmatpush1.xpose.msra.mxu0 0.0
    %2926 = vmatprep.subr.mxu0 0.0
    %2927 = vmatpush1.xpose.msra.mxu0 0.0
    %2928 = vmatprep.subr.mxu0 0.0
    %2929 = vmatpush1.xpose.msra.mxu0 0.0
    %2930 = vmatprep.subr.mxu0 0.0
    %2931 = vmatpush1.xpose.msra.mxu0 0.0
    %2932 = vmatprep.subr.mxu0 0.0
    %2933 = vmatpush1.xpose.msra.mxu0 0.0
    %2934 = vmatprep.subr.mxu0 0.0
    %2935 = vmatpush1.xpose.msra.mxu0 0.0
    %2936 = vmatprep.subr.mxu0 0.0
    %2937 = vmatpush1.xpose.msra.mxu0 0.0
    %2938 = vmatprep.subr.mxu0 0.0
    %2939 = vmatpush1.xpose.msra.mxu0 0.0
    %2940 = vmatprep.subr.mxu0 0.0
    %2941 = vmatpush1.xpose.msra.mxu0 0.0
    %2942 = vmatprep.subr.mxu0 0.0
    %2943 = vmatpush1.xpose.msra.mxu0 0.0
    %2944 = vmatprep.subr.mxu0 0.0
    %2945 = vmatpush1.xpose.msra.mxu0 0.0
    %2946 = vmatprep.subr.mxu0 0.0
    %2947 = vmatpush1.xpose.msra.mxu0 0.0
    %2948 = vmatprep.subr.mxu0 0.0
    %2949 = vmatpush1.xpose.msra.mxu0 0.0
    %2950 = vmatprep.subr.mxu0 0.0
    %2951 = vmatpush1.xpose.msra.mxu0 0.0
    %2952 = vmatprep.subr.mxu0 0.0
    %2953 = vmatpush1.xpose.msra.mxu0 0.0
    %2954 = vmatprep.subr.mxu0 0.0
    %2955 = vmatpush1.xpose.msra.mxu0 0.0
    %2956 = vmatprep.subr.mxu0 0.0
    %2957 = vmatpush1.xpose.msra.mxu0 0.0
    %2958 = vmatprep.subr.mxu0 0.0
    %2959 = vmatpush1.xpose.msra.mxu0 0.0
    %2960 = vmatprep.subr.mxu0 0.0
    %2961 = vmatpush1.xpose.msra.mxu0 0.0
    %2962 = vmatprep.mubr.f32.mxu0 %v2883
    %2963 = vmatmul.mubr.f32.gmra.mrb[0].mxu0 %v2882
    %v2964 = vpop.f32.mrb[0].mxu0
    %v2965 = vadd.f32 %v1327, %v2964
    %v2966 = vpop.f32.mrb[0].mxu0
    %2967 = vdwg.mxu0
    %2968 = vmatprep.subr.mxu0 %v1309
    %2969 = vmatpush1.xpose.msra.mxu0 %v1308
    %2970 = vmatprep.subr.mxu0 %v1317
    %2971 = vmatpush1.xpose.msra.mxu0 %v1316
    %2972 = vmatprep.subr.mxu0 0.0
    %2973 = vmatpush1.xpose.msra.mxu0 0.0
    %2974 = vmatprep.subr.mxu0 0.0
    %2975 = vmatpush1.xpose.msra.mxu0 0.0
    %2976 = vmatprep.subr.mxu0 0.0
    %2977 = vmatpush1.xpose.msra.mxu0 0.0
    %2978 = vmatprep.subr.mxu0 0.0
    %2979 = vmatpush1.xpose.msra.mxu0 0.0
    %2980 = vmatprep.subr.mxu0 0.0
    %2981 = vmatpush1.xpose.msra.mxu0 0.0
    %2982 = vmatprep.subr.mxu0 0.0
    %2983 = vmatpush1.xpose.msra.mxu0 0.0
    %2984 = vmatprep.subr.mxu0 0.0
    %2985 = vmatpush1.xpose.msra.mxu0 0.0
    %2986 = vmatprep.subr.mxu0 0.0
    %2987 = vmatpush1.xpose.msra.mxu0 0.0
    %2988 = vmatprep.subr.mxu0 0.0
    %2989 = vmatpush1.xpose.msra.mxu0 0.0
    %2990 = vmatprep.subr.mxu0 0.0
    %2991 = vmatpush1.xpose.msra.mxu0 0.0
    %2992 = vmatprep.subr.mxu0 0.0
    %2993 = vmatpush1.xpose.msra.mxu0 0.0
    %2994 = vmatprep.subr.mxu0 0.0
    %2995 = vmatpush1.xpose.msra.mxu0 0.0
    %2996 = vmatprep.subr.mxu0 0.0
    %2997 = vmatpush1.xpose.msra.mxu0 0.0
    %2998 = vmatprep.subr.mxu0 0.0
    %2999 = vmatpush1.xpose.msra.mxu0 0.0
    %3000 = vmatprep.subr.mxu0 0.0
    %3001 = vmatpush1.xpose.msra.mxu0 0.0
    %3002 = vmatprep.subr.mxu0 0.0
    %3003 = vmatpush1.xpose.msra.mxu0 0.0
    %3004 = vmatprep.subr.mxu0 0.0
    %3005 = vmatpush1.xpose.msra.mxu0 0.0
    %3006 = vmatprep.subr.mxu0 0.0
    %3007 = vmatpush1.xpose.msra.mxu0 0.0
    %3008 = vmatprep.subr.mxu0 0.0
    %3009 = vmatpush1.xpose.msra.mxu0 0.0
    %3010 = vmatprep.subr.mxu0 0.0
    %3011 = vmatpush1.xpose.msra.mxu0 0.0
    %3012 = vmatprep.subr.mxu0 0.0
    %3013 = vmatpush1.xpose.msra.mxu0 0.0
    %3014 = vmatprep.subr.mxu0 0.0
    %3015 = vmatpush1.xpose.msra.mxu0 0.0
    %3016 = vmatprep.subr.mxu0 0.0
    %3017 = vmatpush1.xpose.msra.mxu0 0.0
    %3018 = vmatprep.subr.mxu0 0.0
    %3019 = vmatpush1.xpose.msra.mxu0 0.0
    %3020 = vmatprep.subr.mxu0 0.0
    %3021 = vmatpush1.xpose.msra.mxu0 0.0
    %3022 = vmatprep.subr.mxu0 0.0
    %3023 = vmatpush1.xpose.msra.mxu0 0.0
    %3024 = vmatprep.subr.mxu0 0.0
    %3025 = vmatpush1.xpose.msra.mxu0 0.0
    %3026 = vmatprep.subr.mxu0 0.0
    %3027 = vmatpush1.xpose.msra.mxu0 0.0
    %3028 = vmatprep.subr.mxu0 0.0
    %3029 = vmatpush1.xpose.msra.mxu0 0.0
    %3030 = vmatprep.subr.mxu0 0.0
    %3031 = vmatpush1.xpose.msra.mxu0 0.0
    %3032 = vmatprep.mubr.f32.mxu0 %v2885
    %3033 = vmatmul.mubr.f32.gmra.mrb[0].mxu0 %v2884
    %v3034 = vpop.f32.mrb[0].mxu0
    %v3035 = vadd.f32 %v2965, %v3034
    %v3036 = vpop.f32.mrb[0].mxu0
    %3037 = vdwg.mxu0
    %3038 = vmatprep.subr.mxu0 %v1311
    %3039 = vmatpush1.xpose.msra.mxu0 %v1310
    %3040 = vmatprep.subr.mxu0 %v1319
    %3041 = vmatpush1.xpose.msra.mxu0 %v1318
    %3042 = vmatprep.subr.mxu0 0.0
    %3043 = vmatpush1.xpose.msra.mxu0 0.0
    %3044 = vmatprep.subr.mxu0 0.0
    %3045 = vmatpush1.xpose.msra.mxu0 0.0
    %3046 = vmatprep.subr.mxu0 0.0
    %3047 = vmatpush1.xpose.msra.mxu0 0.0
    %3048 = vmatprep.subr.mxu0 0.0
    %3049 = vmatpush1.xpose.msra.mxu0 0.0
    %3050 = vmatprep.subr.mxu0 0.0
    %3051 = vmatpush1.xpose.msra.mxu0 0.0
    %3052 = vmatprep.subr.mxu0 0.0
    %3053 = vmatpush1.xpose.msra.mxu0 0.0
    %3054 = vmatprep.subr.mxu0 0.0
    %3055 = vmatpush1.xpose.msra.mxu0 0.0
    %3056 = vmatprep.subr.mxu0 0.0
    %3057 = vmatpush1.xpose.msra.mxu0 0.0
    %3058 = vmatprep.subr.mxu0 0.0
    %3059 = vmatpush1.xpose.msra.mxu0 0.0
    %3060 = vmatprep.subr.mxu0 0.0
    %3061 = vmatpush1.xpose.msra.mxu0 0.0
    %3062 = vmatprep.subr.mxu0 0.0
    %3063 = vmatpush1.xpose.msra.mxu0 0.0
    %3064 = vmatprep.subr.mxu0 0.0
    %3065 = vmatpush1.xpose.msra.mxu0 0.0
    %3066 = vmatprep.subr.mxu0 0.0
    %3067 = vmatpush1.xpose.msra.mxu0 0.0
    %3068 = vmatprep.subr.mxu0 0.0
    %3069 = vmatpush1.xpose.msra.mxu0 0.0
    %3070 = vmatprep.subr.mxu0 0.0
    %3071 = vmatpush1.xpose.msra.mxu0 0.0
    %3072 = vmatprep.subr.mxu0 0.0
    %3073 = vmatpush1.xpose.msra.mxu0 0.0
    %3074 = vmatprep.subr.mxu0 0.0
    %3075 = vmatpush1.xpose.msra.mxu0 0.0
    %3076 = vmatprep.subr.mxu0 0.0
    %3077 = vmatpush1.xpose.msra.mxu0 0.0
    %3078 = vmatprep.subr.mxu0 0.0
    %3079 = vmatpush1.xpose.msra.mxu0 0.0
    %3080 = vmatprep.subr.mxu0 0.0
    %3081 = vmatpush1.xpose.msra.mxu0 0.0
    %3082 = vmatprep.subr.mxu0 0.0
    %3083 = vmatpush1.xpose.msra.mxu0 0.0
    %3084 = vmatprep.subr.mxu0 0.0
    %3085 = vmatpush1.xpose.msra.mxu0 0.0
    %3086 = vmatprep.subr.mxu0 0.0
    %3087 = vmatpush1.xpose.msra.mxu0 0.0
    %3088 = vmatprep.subr.mxu0 0.0
    %3089 = vmatpush1.xpose.msra.mxu0 0.0
    %3090 = vmatprep.subr.mxu0 0.0
    %3091 = vmatpush1.xpose.msra.mxu0 0.0
    %3092 = vmatprep.subr.mxu0 0.0
    %3093 = vmatpush1.xpose.msra.mxu0 0.0
    %3094 = vmatprep.subr.mxu0 0.0
    %3095 = vmatpush1.xpose.msra.mxu0 0.0
    %3096 = vmatprep.subr.mxu0 0.0
    %3097 = vmatpush1.xpose.msra.mxu0 0.0
    %3098 = vmatprep.subr.mxu0 0.0
    %3099 = vmatpush1.xpose.msra.mxu0 0.0
    %3100 = vmatprep.subr.mxu0 0.0
    %3101 = vmatpush1.xpose.msra.mxu0 0.0
    %3102 = vmatprep.mubr.f32.mxu0 %v2887
    %3103 = vmatmul.mubr.f32.gmra.mrb[0].mxu0 %v2886
    %v3104 = vpop.f32.mrb[0].mxu0
    %v3105 = vadd.f32 %v3035, %v3104
    %v3106 = vpop.f32.mrb[0].mxu0
    %3107 = vdwg.mxu0
    %3108 = vmatprep.subr.mxu0 %v1313
    %3109 = vmatpush1.xpose.msra.mxu0 %v1312
    %3110 = vmatprep.subr.mxu0 %v1321
    %3111 = vmatpush1.xpose.msra.mxu0 %v1320
    %3112 = vmatprep.subr.mxu0 0.0
    %3113 = vmatpush1.xpose.msra.mxu0 0.0
    %3114 = vmatprep.subr.mxu0 0.0
    %3115 = vmatpush1.xpose.msra.mxu0 0.0
    %3116 = vmatprep.subr.mxu0 0.0
    %3117 = vmatpush1.xpose.msra.mxu0 0.0
    %3118 = vmatprep.subr.mxu0 0.0
    %3119 = vmatpush1.xpose.msra.mxu0 0.0
    %3120 = vmatprep.subr.mxu0 0.0
    %3121 = vmatpush1.xpose.msra.mxu0 0.0
    %3122 = vmatprep.subr.mxu0 0.0
    %3123 = vmatpush1.xpose.msra.mxu0 0.0
    %3124 = vmatprep.subr.mxu0 0.0
    %3125 = vmatpush1.xpose.msra.mxu0 0.0
    %3126 = vmatprep.subr.mxu0 0.0
    %3127 = vmatpush1.xpose.msra.mxu0 0.0
    %3128 = vmatprep.subr.mxu0 0.0
    %3129 = vmatpush1.xpose.msra.mxu0 0.0
    %3130 = vmatprep.subr.mxu0 0.0
    %3131 = vmatpush1.xpose.msra.mxu0 0.0
    %3132 = vmatprep.subr.mxu0 0.0
    %3133 = vmatpush1.xpose.msra.mxu0 0.0
    %3134 = vmatprep.subr.mxu0 0.0
    %3135 = vmatpush1.xpose.msra.mxu0 0.0
    %3136 = vmatprep.subr.mxu0 0.0
    %3137 = vmatpush1.xpose.msra.mxu0 0.0
    %3138 = vmatprep.subr.mxu0 0.0
    %3139 = vmatpush1.xpose.msra.mxu0 0.0
    %3140 = vmatprep.subr.mxu0 0.0
    %3141 = vmatpush1.xpose.msra.mxu0 0.0
    %3142 = vmatprep.subr.mxu0 0.0
    %3143 = vmatpush1.xpose.msra.mxu0 0.0
    %3144 = vmatprep.subr.mxu0 0.0
    %3145 = vmatpush1.xpose.msra.mxu0 0.0
    %3146 = vmatprep.subr.mxu0 0.0
    %3147 = vmatpush1.xpose.msra.mxu0 0.0
    %3148 = vmatprep.subr.mxu0 0.0
    %3149 = vmatpush1.xpose.msra.mxu0 0.0
    %3150 = vmatprep.subr.mxu0 0.0
    %3151 = vmatpush1.xpose.msra.mxu0 0.0
    %3152 = vmatprep.subr.mxu0 0.0
    %3153 = vmatpush1.xpose.msra.mxu0 0.0
    %3154 = vmatprep.subr.mxu0 0.0
    %3155 = vmatpush1.xpose.msra.mxu0 0.0
    %3156 = vmatprep.subr.mxu0 0.0
    %3157 = vmatpush1.xpose.msra.mxu0 0.0
    %3158 = vmatprep.subr.mxu0 0.0
    %3159 = vmatpush1.xpose.msra.mxu0 0.0
    %3160 = vmatprep.subr.mxu0 0.0
    %3161 = vmatpush1.xpose.msra.mxu0 0.0
    %3162 = vmatprep.subr.mxu0 0.0
    %3163 = vmatpush1.xpose.msra.mxu0 0.0
    %3164 = vmatprep.subr.mxu0 0.0
    %3165 = vmatpush1.xpose.msra.mxu0 0.0
    %3166 = vmatprep.subr.mxu0 0.0
    %3167 = vmatpush1.xpose.msra.mxu0 0.0
    %3168 = vmatprep.subr.mxu0 0.0
    %3169 = vmatpush1.xpose.msra.mxu0 0.0
    %3170 = vmatprep.subr.mxu0 0.0
    %3171 = vmatpush1.xpose.msra.mxu0 0.0
    %3172 = vmatprep.mubr.f32.mxu0 %v2889
    %3173 = vmatmul.mubr.f32.gmra.mrb[0].mxu0 %v2888
    %v3174 = vpop.f32.mrb[0].mxu0
    %v3175 = vadd.f32 %v3105, %v3174
    %v3176 = vpop.f32.mrb[0].mxu0
    %3177 = vdwg.mxu0
    %vm3178 = vcmask 91136
    %3179 = vst.msk [vmem:[#allocation2] sm:$0x3] %vm3178, %v3175
    // Predicated region
    $region18: #{tpu_custom_call.1} parent=1 // pred_check
      _
    $region19: #{tpu_custom_call.1} parent=1 // pred_check_branch
      %3181 = sbr.rel (0) target = $region21
    $region20: #{tpu_custom_call.1} parent=1 // pred_region
      %s3183 = ssub.s32 32, 32
      %3184 = vsyncadd [#allocation3], %s3183
      %s3186 = sshll.u32 [#allocation2], 4
      %s3187 = int_to_ptr.vmem [resolvable:$true] %s3186
      %3189 = dma.vmem_to_hbm [thread:$0]  %s3187, 32, %s4, [#allocation3]
    $region21: #{tpu_custom_call.1} parent=1 // pred_fallthru
      _
    // Predicated region
    $region22: #{tpu_custom_call.1} parent=1 // pred_check
      _
    $region23: #{tpu_custom_call.1} parent=1 // pred_check_branch
      %3191 = sbr.rel (0) target = $region25
    $region24: #{tpu_custom_call.1} parent=1 // pred_region
      %3192 = dma.done [#allocation3], 32
    $region25: #{tpu_custom_call.1} parent=1 // pred_fallthru
      _
    %3193 = vsyncpa [#allocation3], 1

</llo_original>
